<compile_context>
chip_gen: v7x
topology: tpu7x:2x2x1
jax: 0.10.0
libtpu: 0.0.40
codegen_flags: <defaults>
</compile_context>

<pallas_src>
import jax
import jax.numpy as jnp
from jax.experimental import pallas as pl
from jax.experimental.pallas import tpu as pltpu

# ----- model hyperparameters (small, consistent with the module) -----
EMB_SIZES = [4, 4, 4, 4]           # SelectionEmbedding(4,·), Exploration(3,·), Playout(3,·), ScoreBounds(2,·)
EMB_ROWS  = [4, 3, 3, 2]
EMB_OFFSETS = (0, 4, 7, 10)        # running sum of EMB_ROWS (row offset of each table)
ONEHOT_W  = sum(EMB_ROWS)          # 12
EMB_DIM   = sum(EMB_SIZES)         # 16
AGENT_MLP = [32, 32]               # agent_encoder_kwargs['mlp_layer_sizes']
GAME_FEATS = 16                    # game_feature_count
GAME_MLP  = [32, 32]               # game_encoder_kwargs['mlp_layer_sizes']
PRED_MLP  = [32, 1]                # UtilityPredictor mlp_layer_sizes (last layer -> Tanh)
N_PREDICTORS = 3                   # ensemble size
HID = AGENT_MLP[-1]                # 32
PADW = N_PREDICTORS * HID          # 96 : fused lane width of all activations
BATCH = 8


def _relu(x):
    return jnp.maximum(x, 0.0)


# --------------------------- Pallas kernel ---------------------------
def ensemble_kernel(p1_ref, p2_ref, g_ref, w_ref, b_ref, out_ref):
    """Entire UtilityPredictorEnsemble forward (3 predictors + mean), fused."""
    B = g_ref.shape[0]
    relu = lambda v: jnp.maximum(v, 0.0)

    def mm(x, wi):
        return jnp.dot(x, w_ref[wi], preferred_element_type=jnp.float32)

    def one_hot(idx):  # idx: (B, 4) int32 categorical indices
        iota = jax.lax.broadcasted_iota(jnp.int32, (B, PADW), 1)
        oh = jnp.zeros((B, PADW), jnp.float32)
        for i, off in enumerate(EMB_OFFSETS):
            oh = oh + (iota == (idx[:, i:i + 1] + off)).astype(jnp.float32)
        return oh  # combined one-hot over the 4 embedding tables (cols 0..11)

    # In-kernel embedding lookup: one-hot @ (stacked per-predictor tables).
    p1e = mm(one_hot(p1_ref[...]), 0)   # (B,96): predictor e's 16-dim emb in cols 16e..16e+15
    p2e = mm(one_hot(p2_ref[...]), 1)

    # Agent encoders (Linear -> Dropout(id) -> ReLU) x2, all 3 predictors at once.
    a1 = relu(mm(relu(mm(p1e, 2) + b_ref[0]), 3) + b_ref[1])      # (B,96)
    a2 = relu(mm(relu(mm(p2e, 4) + b_ref[2]), 5) + b_ref[3])      # (B,96)

    # Game encoder: shared (B,16) input, per-predictor 32-col output blocks.
    gw1 = w_ref[6][:GAME_FEATS, :]                                # (16,96) value slice
    g1 = relu(jnp.dot(g_ref[...], gw1, preferred_element_type=jnp.float32) + b_ref[4])
    g2 = relu(mm(g1, 7) + b_ref[5])                               # (B,96)

    # Final MLP.  torch.cat([a1,a2,g], dim=1) @ fw1 is replaced by summing three
    # block-diagonal matmuls -> no lane concatenation.
    h = relu(mm(a1, 8) + mm(a2, 9) + mm(g2, 10) + b_ref[6])       # (B,96)
    y = jnp.tanh(mm(h, 11) + b_ref[7])                            # (B,96); col e = predictor e

    # Ensemble mean over the 3 predictors, written once as (B,1).
    out_ref[...] = (y[:, 0:1] + y[:, 1:2] + y[:, 2:3]) * (1.0 / N_PREDICTORS)


# --------------------------- glue / wrapper ---------------------------
@jax.jit
def ensemble_forward(w_slab, b_slab, player_1, player_2, game):
    B = game.shape[0]
    vmem = pl.BlockSpec(memory_space=pltpu.MemorySpace.VMEM)
    bytes_accessed = 4 * (w_slab.size + b_slab.size + game.size
                          + player_1.size + player_2.size + B)
    return pl.pallas_call(
        ensemble_kernel,
        out_shape=jax.ShapeDtypeStruct((B, 1), jnp.float32),
        in_specs=[vmem] * 5,
        out_specs=vmem,
        compiler_params=pltpu.CompilerParams(vmem_limit_bytes=8 * 1024 * 1024),
        cost_estimate=pl.CostEstimate(
            flops=2 * B * PADW * PADW * 12,
            transcendentals=B * PADW,
            bytes_accessed=bytes_accessed),
    )(player_1, player_2, game, w_slab, b_slab)


# --------------------------- parameter init ---------------------------
def init_linear(key, fan_in, fan_out):
    kw, kb = jax.random.split(key)
    bound = 1.0 / (fan_in ** 0.5)
    W = jax.random.uniform(kw, (fan_in, fan_out), jnp.float32, -bound, bound)
    b = jax.random.uniform(kb, (1, fan_out), jnp.float32, -bound, bound)
    return W, b


def init_mlp(key, in_dim, layer_sizes):
    params = []
    for out_dim in layer_sizes:
        key, sub = jax.random.split(key)
        W, b = init_linear(sub, in_dim, out_dim)
        params.extend([W, b])
        in_dim = out_dim
    return params


def init_agent_embeddings(key):
    tables = []
    for rows, dim in zip(EMB_ROWS, EMB_SIZES):
        key, sub = jax.random.split(key)
        tables.append(jax.random.normal(sub, (rows, dim), jnp.float32))
    return tables


def init_predictor(key):
    k = jax.random.split(key, 6)
    return {
        "a1_emb": init_agent_embeddings(k[0]),
        "a2_emb": init_agent_embeddings(k[1]),
        "a1_mlp": init_mlp(k[2], EMB_DIM, AGENT_MLP),
        "a2_mlp": init_mlp(k[3], EMB_DIM, AGENT_MLP),
        "g_mlp":  init_mlp(k[4], GAME_FEATS, GAME_MLP),
        "f_mlp":  init_mlp(k[5], AGENT_MLP[-1] * 2 + GAME_MLP[-1], PRED_MLP),
    }


# --------------------------- weight packing (done once, outside jit) ---------------------------
def _block_diag_embed(tables):
    """The 4 embedding lookups + concat as a single (12,16) gather matrix."""
    E = jnp.zeros((ONEHOT_W, EMB_DIM), jnp.float32)
    r = c = 0
    for t, nr, nc in zip(tables, EMB_ROWS, EMB_SIZES):
        E = E.at[r:r + nr, c:c + nc].set(t)
        r += nr
        c += nc
    return E


def _assemble(blocks, row_stride, col_stride):
    """Place per-predictor block e at (e*row_stride, e*col_stride) inside (96,96)."""
    W = jnp.zeros((PADW, PADW), jnp.float32)
    for e, blk in enumerate(blocks):
        r, c = e * row_stride, e * col_stride
        W = W.at[r:r + blk.shape[0], c:c + blk.shape[1]].set(blk)
    return W


def pack_params(all_params):
    """Fuse the 3 predictors' weights into block-diagonal ensemble slabs."""
    def col(key, idx):
        return [p[key][idx] for p in all_params]

    w_slab = jnp.stack([
        _assemble([_block_diag_embed(p["a1_emb"]) for p in all_params], 0, EMB_DIM),   # 0
        _assemble([_block_diag_embed(p["a2_emb"]) for p in all_params], 0, EMB_DIM),   # 1
        _assemble(col("a1_mlp", 0), EMB_DIM, HID),                                     # 2
        _assemble(col("a1_mlp", 2), HID, HID),                                         # 3
        _assemble(col("a2_mlp", 0), EMB_DIM, HID),                                     # 4
        _assemble(col("a2_mlp", 2), HID, HID),                                         # 5
        _assemble(col("g_mlp", 0), 0, HID),                                            # 6
        _assemble(col("g_mlp", 2), HID, HID),                                          # 7
        _assemble([p["f_mlp"][0][0:HID, :] for p in all_params], HID, HID),            # 8
        _assemble([p["f_mlp"][0][HID:2 * HID, :] for p in all_params], HID, HID),      # 9
        _assemble([p["f_mlp"][0][2 * HID:3 * HID, :] for p in all_params], HID, HID),  # 10
        _assemble(col("f_mlp", 2), HID, 1),                                            # 11
    ])  # (12, 96, 96)

    def cat_bias(key, idx):
        b = jnp.zeros((1, PADW), jnp.float32)
        for e, p in enumerate(all_params):
            vec = p[key][idx]
            b = b.at[:, e * HID:e * HID + vec.shape[1]].set(vec)
        return b

    fb2 = jnp.zeros((1, PADW), jnp.float32)
    for e, p in enumerate(all_params):
        fb2 = fb2.at[0, e].set(p["f_mlp"][3][0, 0])   # final-layer bias lives in column e

    b_slab = jnp.stack([
        cat_bias("a1_mlp", 1), cat_bias("a1_mlp", 3),
        cat_bias("a2_mlp", 1), cat_bias("a2_mlp", 3),
        cat_bias("g_mlp", 1), cat_bias("g_mlp", 3),
        cat_bias("f_mlp", 1),
        fb2,
    ])  # (8, 1, 96)
    return w_slab, b_slab


# --------------------------- pure-JAX reference ---------------------------
def embed_agent(x_int, tables):
    parts = [tables[i][x_int[:, i]] for i in range(4)]
    return jnp.concatenate(parts, axis=1)


def ref_predictor(params, player_1, player_2, game):
    def mlp2(x, w):
        W1, b1, W2, b2 = w
        return _relu(_relu(x @ W1 + b1) @ W2 + b2)

    a1 = mlp2(embed_agent(player_1, params["a1_emb"]), params["a1_mlp"])
    a2 = mlp2(embed_agent(player_2, params["a2_emb"]), params["a2_mlp"])
    g = mlp2(game, params["g_mlp"])
    x = jnp.concatenate([a1, a2, g], axis=1)
    fw1, fb1, fw2, fb2 = params["f_mlp"]
    return jnp.tanh(_relu(x @ fw1 + fb1) @ fw2 + fb2)


def ref_ensemble(all_params, player_1, player_2, game):
    preds = [ref_predictor(p, player_1, player_2, game) for p in all_params]
    return jnp.mean(jnp.stack(preds, axis=1), axis=1)


# --------------------------- main ---------------------------
if __name__ == "__main__":
    key = jax.random.PRNGKey(0)
    k_params, k_p1, k_p2, k_game = jax.random.split(key, 4)

    all_params = [init_predictor(k) for k in jax.random.split(k_params, N_PREDICTORS)]
    w_slab, b_slab = pack_params(all_params)   # packed once, outside the jitted forward

    # player_1 / player_2: (B, 4) categorical indices within each embedding's range.
    maxvals = jnp.array(EMB_ROWS, dtype=jnp.int32)
    player_1 = (jax.random.randint(k_p1, (BATCH, 4), 0, 1000) % maxvals).astype(jnp.int32)
    player_2 = (jax.random.randint(k_p2, (BATCH, 4), 0, 1000) % maxvals).astype(jnp.int32)
    game = jax.random.normal(k_game, (BATCH, GAME_FEATS), jnp.float32)

    out = ensemble_forward(w_slab, b_slab, player_1, player_2, game)
    out = jax.block_until_ready(out)

    expected = ref_ensemble(all_params, player_1, player_2, game)
    assert out.shape == (BATCH, 1), out.shape
    assert jnp.allclose(out, expected, atol=1e-5, rtol=1e-5), (out, expected)

    print("KERNEL_OK")
</pallas_src>

<mosaic_0001>
module attributes {stable_mosaic.version = 11 : i64} {
  func.func @ensemble_kernel(%arg0: memref<8x4xi32, #tpu.memory_space<vmem>>, %arg1: memref<8x4xi32, #tpu.memory_space<vmem>>, %arg2: memref<8x16xf32, #tpu.memory_space<vmem>>, %arg3: memref<12x96x96xf32, #tpu.memory_space<vmem>>, %arg4: memref<8x1x96xf32, #tpu.memory_space<vmem>>, %arg5: memref<8x1xf32, #tpu.memory_space<vmem>>) attributes {dimension_semantics = [], scalar_prefetch = 0 : i64, scratch_operands = 0 : i64, tpu.core_type = #tpu.core_type<tc>} {
    %c0 = arith.constant 0 : index
    %c0_0 = arith.constant 0 : index
    %0 = vector.load %arg0[%c0, %c0_0] : memref<8x4xi32, #tpu.memory_space<vmem>>, vector<8x4xi32>
    %1 = tpu.iota {dimensions = array<i32: 1>} : vector<8x96xi32>
    %cst = arith.constant 0.000000e+00 : f32
    %2 = vector.broadcast %cst : f32 to vector<8x96xf32>
    %3 = vector.extract_strided_slice %0 {offsets = [0, 0], sizes = [8, 1], strides = [1, 1]} : vector<8x4xi32> to vector<8x1xi32>
    %c0_i32 = arith.constant 0 : i32
    %4 = vector.broadcast %c0_i32 : i32 to vector<8x1xi32>
    %5 = arith.addi %3, %4 : vector<8x1xi32>
    %6 = vector.broadcast %5 : vector<8x1xi32> to vector<8x96xi32>
    %7 = arith.cmpi eq, %1, %6 : vector<8x96xi32>
    %8 = arith.extui %7 : vector<8x96xi1> to vector<8x96xi32>
    %9 = arith.sitofp %8 : vector<8x96xi32> to vector<8x96xf32>
    %10 = arith.addf %2, %9 : vector<8x96xf32>
    %11 = vector.extract_strided_slice %0 {offsets = [0, 1], sizes = [8, 1], strides = [1, 1]} : vector<8x4xi32> to vector<8x1xi32>
    %c4_i32 = arith.constant 4 : i32
    %12 = vector.broadcast %c4_i32 : i32 to vector<8x1xi32>
    %13 = arith.addi %11, %12 : vector<8x1xi32>
    %14 = vector.broadcast %13 : vector<8x1xi32> to vector<8x96xi32>
    %15 = arith.cmpi eq, %1, %14 : vector<8x96xi32>
    %16 = arith.extui %15 : vector<8x96xi1> to vector<8x96xi32>
    %17 = arith.sitofp %16 : vector<8x96xi32> to vector<8x96xf32>
    %18 = arith.addf %10, %17 : vector<8x96xf32>
    %19 = vector.extract_strided_slice %0 {offsets = [0, 2], sizes = [8, 1], strides = [1, 1]} : vector<8x4xi32> to vector<8x1xi32>
    %c7_i32 = arith.constant 7 : i32
    %20 = vector.broadcast %c7_i32 : i32 to vector<8x1xi32>
    %21 = arith.addi %19, %20 : vector<8x1xi32>
    %22 = vector.broadcast %21 : vector<8x1xi32> to vector<8x96xi32>
    %23 = arith.cmpi eq, %1, %22 : vector<8x96xi32>
    %24 = arith.extui %23 : vector<8x96xi1> to vector<8x96xi32>
    %25 = arith.sitofp %24 : vector<8x96xi32> to vector<8x96xf32>
    %26 = arith.addf %18, %25 : vector<8x96xf32>
    %27 = vector.extract_strided_slice %0 {offsets = [0, 3], sizes = [8, 1], strides = [1, 1]} : vector<8x4xi32> to vector<8x1xi32>
    %c10_i32 = arith.constant 10 : i32
    %28 = vector.broadcast %c10_i32 : i32 to vector<8x1xi32>
    %29 = arith.addi %27, %28 : vector<8x1xi32>
    %30 = vector.broadcast %29 : vector<8x1xi32> to vector<8x96xi32>
    %31 = arith.cmpi eq, %1, %30 : vector<8x96xi32>
    %32 = arith.extui %31 : vector<8x96xi1> to vector<8x96xi32>
    %33 = arith.sitofp %32 : vector<8x96xi32> to vector<8x96xf32>
    %34 = arith.addf %26, %33 : vector<8x96xf32>
    %c0_1 = arith.constant 0 : index
    %c0_2 = arith.constant 0 : index
    %c0_3 = arith.constant 0 : index
    %35 = vector.load %arg3[%c0_1, %c0_2, %c0_3] : memref<12x96x96xf32, #tpu.memory_space<vmem>>, vector<1x96x96xf32>
    %36 = vector.shape_cast %35 : vector<1x96x96xf32> to vector<96x96xf32>
    %cst_4 = arith.constant dense<0.000000e+00> : vector<8x96xf32>
    %37 = tpu.matmul %34, %36, %cst_4 {dimension_numbers = #tpu.dot_dimension_numbers<[1], [0], [0], [1], [0, 0, 1, 1], [], []>} : vector<8x96xf32>, vector<96x96xf32>, vector<8x96xf32> -> vector<8x96xf32>
    %c0_5 = arith.constant 0 : index
    %c0_6 = arith.constant 0 : index
    %38 = vector.load %arg1[%c0_5, %c0_6] : memref<8x4xi32, #tpu.memory_space<vmem>>, vector<8x4xi32>
    %39 = tpu.iota {dimensions = array<i32: 1>} : vector<8x96xi32>
    %cst_7 = arith.constant 0.000000e+00 : f32
    %40 = vector.broadcast %cst_7 : f32 to vector<8x96xf32>
    %41 = vector.extract_strided_slice %38 {offsets = [0, 0], sizes = [8, 1], strides = [1, 1]} : vector<8x4xi32> to vector<8x1xi32>
    %c0_i32_8 = arith.constant 0 : i32
    %42 = vector.broadcast %c0_i32_8 : i32 to vector<8x1xi32>
    %43 = arith.addi %41, %42 : vector<8x1xi32>
    %44 = vector.broadcast %43 : vector<8x1xi32> to vector<8x96xi32>
    %45 = arith.cmpi eq, %39, %44 : vector<8x96xi32>
    %46 = arith.extui %45 : vector<8x96xi1> to vector<8x96xi32>
    %47 = arith.sitofp %46 : vector<8x96xi32> to vector<8x96xf32>
    %48 = arith.addf %40, %47 : vector<8x96xf32>
    %49 = vector.extract_strided_slice %38 {offsets = [0, 1], sizes = [8, 1], strides = [1, 1]} : vector<8x4xi32> to vector<8x1xi32>
    %c4_i32_9 = arith.constant 4 : i32
    %50 = vector.broadcast %c4_i32_9 : i32 to vector<8x1xi32>
    %51 = arith.addi %49, %50 : vector<8x1xi32>
    %52 = vector.broadcast %51 : vector<8x1xi32> to vector<8x96xi32>
    %53 = arith.cmpi eq, %39, %52 : vector<8x96xi32>
    %54 = arith.extui %53 : vector<8x96xi1> to vector<8x96xi32>
    %55 = arith.sitofp %54 : vector<8x96xi32> to vector<8x96xf32>
    %56 = arith.addf %48, %55 : vector<8x96xf32>
    %57 = vector.extract_strided_slice %38 {offsets = [0, 2], sizes = [8, 1], strides = [1, 1]} : vector<8x4xi32> to vector<8x1xi32>
    %c7_i32_10 = arith.constant 7 : i32
    %58 = vector.broadcast %c7_i32_10 : i32 to vector<8x1xi32>
    %59 = arith.addi %57, %58 : vector<8x1xi32>
    %60 = vector.broadcast %59 : vector<8x1xi32> to vector<8x96xi32>
    %61 = arith.cmpi eq, %39, %60 : vector<8x96xi32>
    %62 = arith.extui %61 : vector<8x96xi1> to vector<8x96xi32>
    %63 = arith.sitofp %62 : vector<8x96xi32> to vector<8x96xf32>
    %64 = arith.addf %56, %63 : vector<8x96xf32>
    %65 = vector.extract_strided_slice %38 {offsets = [0, 3], sizes = [8, 1], strides = [1, 1]} : vector<8x4xi32> to vector<8x1xi32>
    %c10_i32_11 = arith.constant 10 : i32
    %66 = vector.broadcast %c10_i32_11 : i32 to vector<8x1xi32>
    %67 = arith.addi %65, %66 : vector<8x1xi32>
    %68 = vector.broadcast %67 : vector<8x1xi32> to vector<8x96xi32>
    %69 = arith.cmpi eq, %39, %68 : vector<8x96xi32>
    %70 = arith.extui %69 : vector<8x96xi1> to vector<8x96xi32>
    %71 = arith.sitofp %70 : vector<8x96xi32> to vector<8x96xf32>
    %72 = arith.addf %64, %71 : vector<8x96xf32>
    %c1 = arith.constant 1 : index
    %c0_12 = arith.constant 0 : index
    %c0_13 = arith.constant 0 : index
    %73 = vector.load %arg3[%c1, %c0_12, %c0_13] : memref<12x96x96xf32, #tpu.memory_space<vmem>>, vector<1x96x96xf32>
    %74 = vector.shape_cast %73 : vector<1x96x96xf32> to vector<96x96xf32>
    %cst_14 = arith.constant dense<0.000000e+00> : vector<8x96xf32>
    %75 = tpu.matmul %72, %74, %cst_14 {dimension_numbers = #tpu.dot_dimension_numbers<[1], [0], [0], [1], [0, 0, 1, 1], [], []>} : vector<8x96xf32>, vector<96x96xf32>, vector<8x96xf32> -> vector<8x96xf32>
    %c2 = arith.constant 2 : index
    %c0_15 = arith.constant 0 : index
    %c0_16 = arith.constant 0 : index
    %76 = vector.load %arg3[%c2, %c0_15, %c0_16] : memref<12x96x96xf32, #tpu.memory_space<vmem>>, vector<1x96x96xf32>
    %77 = vector.shape_cast %76 : vector<1x96x96xf32> to vector<96x96xf32>
    %cst_17 = arith.constant dense<0.000000e+00> : vector<8x96xf32>
    %78 = tpu.matmul %37, %77, %cst_17 {dimension_numbers = #tpu.dot_dimension_numbers<[1], [0], [0], [1], [0, 0, 1, 1], [], []>} : vector<8x96xf32>, vector<96x96xf32>, vector<8x96xf32> -> vector<8x96xf32>
    %c0_18 = arith.constant 0 : index
    %c0_19 = arith.constant 0 : index
    %c0_20 = arith.constant 0 : index
    %79 = vector.load %arg4[%c0_18, %c0_19, %c0_20] : memref<8x1x96xf32, #tpu.memory_space<vmem>>, vector<1x1x96xf32>
    %80 = vector.shape_cast %79 : vector<1x1x96xf32> to vector<1x96xf32>
    %81 = vector.broadcast %80 : vector<1x96xf32> to vector<8x96xf32>
    %82 = arith.addf %78, %81 : vector<8x96xf32>
    %cst_21 = arith.constant 0.000000e+00 : f32
    %83 = vector.broadcast %cst_21 : f32 to vector<8x96xf32>
    %84 = arith.maximumf %82, %83 : vector<8x96xf32>
    %c3 = arith.constant 3 : index
    %c0_22 = arith.constant 0 : index
    %c0_23 = arith.constant 0 : index
    %85 = vector.load %arg3[%c3, %c0_22, %c0_23] : memref<12x96x96xf32, #tpu.memory_space<vmem>>, vector<1x96x96xf32>
    %86 = vector.shape_cast %85 : vector<1x96x96xf32> to vector<96x96xf32>
    %cst_24 = arith.constant dense<0.000000e+00> : vector<8x96xf32>
    %87 = tpu.matmul %84, %86, %cst_24 {dimension_numbers = #tpu.dot_dimension_numbers<[1], [0], [0], [1], [0, 0, 1, 1], [], []>} : vector<8x96xf32>, vector<96x96xf32>, vector<8x96xf32> -> vector<8x96xf32>
    %c1_25 = arith.constant 1 : index
    %c0_26 = arith.constant 0 : index
    %c0_27 = arith.constant 0 : index
    %88 = vector.load %arg4[%c1_25, %c0_26, %c0_27] : memref<8x1x96xf32, #tpu.memory_space<vmem>>, vector<1x1x96xf32>
    %89 = vector.shape_cast %88 : vector<1x1x96xf32> to vector<1x96xf32>
    %90 = vector.broadcast %89 : vector<1x96xf32> to vector<8x96xf32>
    %91 = arith.addf %87, %90 : vector<8x96xf32>
    %cst_28 = arith.constant 0.000000e+00 : f32
    %92 = vector.broadcast %cst_28 : f32 to vector<8x96xf32>
    %93 = arith.maximumf %91, %92 : vector<8x96xf32>
    %c4 = arith.constant 4 : index
    %c0_29 = arith.constant 0 : index
    %c0_30 = arith.constant 0 : index
    %94 = vector.load %arg3[%c4, %c0_29, %c0_30] : memref<12x96x96xf32, #tpu.memory_space<vmem>>, vector<1x96x96xf32>
    %95 = vector.shape_cast %94 : vector<1x96x96xf32> to vector<96x96xf32>
    %cst_31 = arith.constant dense<0.000000e+00> : vector<8x96xf32>
    %96 = tpu.matmul %75, %95, %cst_31 {dimension_numbers = #tpu.dot_dimension_numbers<[1], [0], [0], [1], [0, 0, 1, 1], [], []>} : vector<8x96xf32>, vector<96x96xf32>, vector<8x96xf32> -> vector<8x96xf32>
    %c2_32 = arith.constant 2 : index
    %c0_33 = arith.constant 0 : index
    %c0_34 = arith.constant 0 : index
    %97 = vector.load %arg4[%c2_32, %c0_33, %c0_34] : memref<8x1x96xf32, #tpu.memory_space<vmem>>, vector<1x1x96xf32>
    %98 = vector.shape_cast %97 : vector<1x1x96xf32> to vector<1x96xf32>
    %99 = vector.broadcast %98 : vector<1x96xf32> to vector<8x96xf32>
    %100 = arith.addf %96, %99 : vector<8x96xf32>
    %cst_35 = arith.constant 0.000000e+00 : f32
    %101 = vector.broadcast %cst_35 : f32 to vector<8x96xf32>
    %102 = arith.maximumf %100, %101 : vector<8x96xf32>
    %c5 = arith.constant 5 : index
    %c0_36 = arith.constant 0 : index
    %c0_37 = arith.constant 0 : index
    %103 = vector.load %arg3[%c5, %c0_36, %c0_37] : memref<12x96x96xf32, #tpu.memory_space<vmem>>, vector<1x96x96xf32>
    %104 = vector.shape_cast %103 : vector<1x96x96xf32> to vector<96x96xf32>
    %cst_38 = arith.constant dense<0.000000e+00> : vector<8x96xf32>
    %105 = tpu.matmul %102, %104, %cst_38 {dimension_numbers = #tpu.dot_dimension_numbers<[1], [0], [0], [1], [0, 0, 1, 1], [], []>} : vector<8x96xf32>, vector<96x96xf32>, vector<8x96xf32> -> vector<8x96xf32>
    %c3_39 = arith.constant 3 : index
    %c0_40 = arith.constant 0 : index
    %c0_41 = arith.constant 0 : index
    %106 = vector.load %arg4[%c3_39, %c0_40, %c0_41] : memref<8x1x96xf32, #tpu.memory_space<vmem>>, vector<1x1x96xf32>
    %107 = vector.shape_cast %106 : vector<1x1x96xf32> to vector<1x96xf32>
    %108 = vector.broadcast %107 : vector<1x96xf32> to vector<8x96xf32>
    %109 = arith.addf %105, %108 : vector<8x96xf32>
    %cst_42 = arith.constant 0.000000e+00 : f32
    %110 = vector.broadcast %cst_42 : f32 to vector<8x96xf32>
    %111 = arith.maximumf %109, %110 : vector<8x96xf32>
    %c6 = arith.constant 6 : index
    %c0_43 = arith.constant 0 : index
    %c0_44 = arith.constant 0 : index
    %112 = vector.load %arg3[%c6, %c0_43, %c0_44] : memref<12x96x96xf32, #tpu.memory_space<vmem>>, vector<1x96x96xf32>
    %113 = vector.shape_cast %112 : vector<1x96x96xf32> to vector<96x96xf32>
    %114 = vector.extract_strided_slice %113 {offsets = [0, 0], sizes = [16, 96], strides = [1, 1]} : vector<96x96xf32> to vector<16x96xf32>
    %c0_45 = arith.constant 0 : index
    %c0_46 = arith.constant 0 : index
    %115 = vector.load %arg2[%c0_45, %c0_46] : memref<8x16xf32, #tpu.memory_space<vmem>>, vector<8x16xf32>
    %cst_47 = arith.constant dense<0.000000e+00> : vector<8x96xf32>
    %116 = tpu.matmul %115, %114, %cst_47 {dimension_numbers = #tpu.dot_dimension_numbers<[1], [0], [0], [1], [0, 0, 1, 1], [], []>} : vector<8x16xf32>, vector<16x96xf32>, vector<8x96xf32> -> vector<8x96xf32>
    %c4_48 = arith.constant 4 : index
    %c0_49 = arith.constant 0 : index
    %c0_50 = arith.constant 0 : index
    %117 = vector.load %arg4[%c4_48, %c0_49, %c0_50] : memref<8x1x96xf32, #tpu.memory_space<vmem>>, vector<1x1x96xf32>
    %118 = vector.shape_cast %117 : vector<1x1x96xf32> to vector<1x96xf32>
    %119 = vector.broadcast %118 : vector<1x96xf32> to vector<8x96xf32>
    %120 = arith.addf %116, %119 : vector<8x96xf32>
    %cst_51 = arith.constant 0.000000e+00 : f32
    %121 = vector.broadcast %cst_51 : f32 to vector<8x96xf32>
    %122 = arith.maximumf %120, %121 : vector<8x96xf32>
    %c7 = arith.constant 7 : index
    %c0_52 = arith.constant 0 : index
    %c0_53 = arith.constant 0 : index
    %123 = vector.load %arg3[%c7, %c0_52, %c0_53] : memref<12x96x96xf32, #tpu.memory_space<vmem>>, vector<1x96x96xf32>
    %124 = vector.shape_cast %123 : vector<1x96x96xf32> to vector<96x96xf32>
    %cst_54 = arith.constant dense<0.000000e+00> : vector<8x96xf32>
    %125 = tpu.matmul %122, %124, %cst_54 {dimension_numbers = #tpu.dot_dimension_numbers<[1], [0], [0], [1], [0, 0, 1, 1], [], []>} : vector<8x96xf32>, vector<96x96xf32>, vector<8x96xf32> -> vector<8x96xf32>
    %c5_55 = arith.constant 5 : index
    %c0_56 = arith.constant 0 : index
    %c0_57 = arith.constant 0 : index
    %126 = vector.load %arg4[%c5_55, %c0_56, %c0_57] : memref<8x1x96xf32, #tpu.memory_space<vmem>>, vector<1x1x96xf32>
    %127 = vector.shape_cast %126 : vector<1x1x96xf32> to vector<1x96xf32>
    %128 = vector.broadcast %127 : vector<1x96xf32> to vector<8x96xf32>
    %129 = arith.addf %125, %128 : vector<8x96xf32>
    %cst_58 = arith.constant 0.000000e+00 : f32
    %130 = vector.broadcast %cst_58 : f32 to vector<8x96xf32>
    %131 = arith.maximumf %129, %130 : vector<8x96xf32>
    %c8 = arith.constant 8 : index
    %c0_59 = arith.constant 0 : index
    %c0_60 = arith.constant 0 : index
    %132 = vector.load %arg3[%c8, %c0_59, %c0_60] : memref<12x96x96xf32, #tpu.memory_space<vmem>>, vector<1x96x96xf32>
    %133 = vector.shape_cast %132 : vector<1x96x96xf32> to vector<96x96xf32>
    %cst_61 = arith.constant dense<0.000000e+00> : vector<8x96xf32>
    %134 = tpu.matmul %93, %133, %cst_61 {dimension_numbers = #tpu.dot_dimension_numbers<[1], [0], [0], [1], [0, 0, 1, 1], [], []>} : vector<8x96xf32>, vector<96x96xf32>, vector<8x96xf32> -> vector<8x96xf32>
    %c9 = arith.constant 9 : index
    %c0_62 = arith.constant 0 : index
    %c0_63 = arith.constant 0 : index
    %135 = vector.load %arg3[%c9, %c0_62, %c0_63] : memref<12x96x96xf32, #tpu.memory_space<vmem>>, vector<1x96x96xf32>
    %136 = vector.shape_cast %135 : vector<1x96x96xf32> to vector<96x96xf32>
    %cst_64 = arith.constant dense<0.000000e+00> : vector<8x96xf32>
    %137 = tpu.matmul %111, %136, %cst_64 {dimension_numbers = #tpu.dot_dimension_numbers<[1], [0], [0], [1], [0, 0, 1, 1], [], []>} : vector<8x96xf32>, vector<96x96xf32>, vector<8x96xf32> -> vector<8x96xf32>
    %138 = arith.addf %134, %137 : vector<8x96xf32>
    %c10 = arith.constant 10 : index
    %c0_65 = arith.constant 0 : index
    %c0_66 = arith.constant 0 : index
    %139 = vector.load %arg3[%c10, %c0_65, %c0_66] : memref<12x96x96xf32, #tpu.memory_space<vmem>>, vector<1x96x96xf32>
    %140 = vector.shape_cast %139 : vector<1x96x96xf32> to vector<96x96xf32>
    %cst_67 = arith.constant dense<0.000000e+00> : vector<8x96xf32>
    %141 = tpu.matmul %131, %140, %cst_67 {dimension_numbers = #tpu.dot_dimension_numbers<[1], [0], [0], [1], [0, 0, 1, 1], [], []>} : vector<8x96xf32>, vector<96x96xf32>, vector<8x96xf32> -> vector<8x96xf32>
    %142 = arith.addf %138, %141 : vector<8x96xf32>
    %c6_68 = arith.constant 6 : index
    %c0_69 = arith.constant 0 : index
    %c0_70 = arith.constant 0 : index
    %143 = vector.load %arg4[%c6_68, %c0_69, %c0_70] : memref<8x1x96xf32, #tpu.memory_space<vmem>>, vector<1x1x96xf32>
    %144 = vector.shape_cast %143 : vector<1x1x96xf32> to vector<1x96xf32>
    %145 = vector.broadcast %144 : vector<1x96xf32> to vector<8x96xf32>
    %146 = arith.addf %142, %145 : vector<8x96xf32>
    %cst_71 = arith.constant 0.000000e+00 : f32
    %147 = vector.broadcast %cst_71 : f32 to vector<8x96xf32>
    %148 = arith.maximumf %146, %147 : vector<8x96xf32>
    %c11 = arith.constant 11 : index
    %c0_72 = arith.constant 0 : index
    %c0_73 = arith.constant 0 : index
    %149 = vector.load %arg3[%c11, %c0_72, %c0_73] : memref<12x96x96xf32, #tpu.memory_space<vmem>>, vector<1x96x96xf32>
    %150 = vector.shape_cast %149 : vector<1x96x96xf32> to vector<96x96xf32>
    %cst_74 = arith.constant dense<0.000000e+00> : vector<8x96xf32>
    %151 = tpu.matmul %148, %150, %cst_74 {dimension_numbers = #tpu.dot_dimension_numbers<[1], [0], [0], [1], [0, 0, 1, 1], [], []>} : vector<8x96xf32>, vector<96x96xf32>, vector<8x96xf32> -> vector<8x96xf32>
    %c7_75 = arith.constant 7 : index
    %c0_76 = arith.constant 0 : index
    %c0_77 = arith.constant 0 : index
    %152 = vector.load %arg4[%c7_75, %c0_76, %c0_77] : memref<8x1x96xf32, #tpu.memory_space<vmem>>, vector<1x1x96xf32>
    %153 = vector.shape_cast %152 : vector<1x1x96xf32> to vector<1x96xf32>
    %154 = vector.broadcast %153 : vector<1x96xf32> to vector<8x96xf32>
    %155 = arith.addf %151, %154 : vector<8x96xf32>
    %156 = math.tanh %155 : vector<8x96xf32>
    %157 = vector.extract_strided_slice %156 {offsets = [0, 0], sizes = [8, 1], strides = [1, 1]} : vector<8x96xf32> to vector<8x1xf32>
    %158 = vector.extract_strided_slice %156 {offsets = [0, 1], sizes = [8, 1], strides = [1, 1]} : vector<8x96xf32> to vector<8x1xf32>
    %159 = arith.addf %157, %158 : vector<8x1xf32>
    %160 = vector.extract_strided_slice %156 {offsets = [0, 2], sizes = [8, 1], strides = [1, 1]} : vector<8x96xf32> to vector<8x1xf32>
    %161 = arith.addf %159, %160 : vector<8x1xf32>
    %cst_78 = arith.constant 0.333333343 : f32
    %162 = vector.broadcast %cst_78 : f32 to vector<8x1xf32>
    %163 = arith.mulf %161, %162 : vector<8x1xf32>
    %c0_79 = arith.constant 0 : index
    %c0_80 = arith.constant 0 : index
    %164 = vector.load %arg5[%c0_79, %c0_80] : memref<8x1xf32, #tpu.memory_space<vmem>>, vector<8x1xf32>
    tpu.vector_store %arg5[%c0_79, %c0_80], %163 {strides = array<i32>} : memref<8x1xf32, #tpu.memory_space<vmem>>, vector<8x1xf32>,
    return
  }
}

</mosaic_0001>

<llo_original>
// kernel: ensemble_forward.1
$region0: #{ensemble_forward.1}
  #allocation0 [shape = 'u32[]', space=smem, size = 0x4, offset = 0x4, fixed_abs, tag = 'smem constant byte address 0x4 - core index']
  #allocation1 [shape = 'u32[144,128]{1,0:T(1,128)}', space=vmem, size = 0x12000, scoped, tag = 'internal scratch']
  %s0 = inlined_call_operand.vmem [shape: s32[8,4], index: 0, kind: input, shape index: {}]
  %s1 = inlined_call_operand.vmem [shape: s32[8,4], index: 1, kind: input, shape index: {}]
  %s2 = inlined_call_operand.vmem [shape: f32[8,16], index: 2, kind: input, shape index: {}]
  %s3 = inlined_call_operand.hbm [shape: f32[12,96,96], index: 3, kind: input, shape index: {}]
  %s4 = inlined_call_operand.vmem [shape: f32[8,1,96], index: 4, kind: input, shape index: {}]
  %s5 = inlined_call_operand.vmem [shape: f32[8,1], index: 5, kind: output, shape index: {}]
  %s6 = sld [smem:[#allocation0]]
  $region34: #{ensemble_forward.1} parent=0
    _
  %s8 = ssub.s32 1, %s6
  %s9 = scalar_select 0, %s8, %s6
  $region1: #{ensemble_forward.1} parent=0
    #allocation2 [shape = 'u8[589824]{0}', space=vmem, size = 0x90000, scoped, tag = 'input window, operand 3, single buffered']
    #allocation3 [shape = 's32[1]{0}', space=sflag, size = 0x4, scoped, tag = 'scoped memory for ensemble_forward.1']
    %10 = vsyncpa [#allocation3], 0
    // Predicated region
    $region2: #{ensemble_forward.1} parent=1 // pred_check
      _
    $region3: #{ensemble_forward.1} parent=1 // pred_check_branch
      %12 = sbr.rel (0) target = $region5
    $region4: #{ensemble_forward.1} parent=1 // pred_region
      _
    $region5: #{ensemble_forward.1} parent=1 // pred_fallthru
      _
    // Predicated region
    $region6: #{ensemble_forward.1} parent=1 // pred_check
      _
    $region7: #{ensemble_forward.1} parent=1 // pred_check_branch
      %14 = sbr.rel (0) target = $region9
    $region8: #{ensemble_forward.1} parent=1 // pred_region
      _
    $region9: #{ensemble_forward.1} parent=1 // pred_fallthru
      _
    // Predicated region
    $region10: #{ensemble_forward.1} parent=1 // pred_check
      _
    $region11: #{ensemble_forward.1} parent=1 // pred_check_branch
      %16 = sbr.rel (0) target = $region13
    $region12: #{ensemble_forward.1} parent=1 // pred_region
      _
    $region13: #{ensemble_forward.1} parent=1 // pred_fallthru
      _
    // Predicated region
    $region14: #{ensemble_forward.1} parent=1 // pred_check
      _
    $region15: #{ensemble_forward.1} parent=1 // pred_check_branch
      %18 = sbr.rel (0) target = $region17
    $region16: #{ensemble_forward.1} parent=1 // pred_region
      %s20 = ssub.s32 18432, 18432
      %21 = vsyncadd [#allocation3], %s20
      %s22 = sshll.u32 [#allocation2], 4
      %s23 = int_to_ptr.vmem [resolvable:$true] %s22
      %28 = dma.hbm_to_vmem [thread:$0]  %s3, 18432, %s23, [#allocation3], 128, 128, 8
    $region17: #{ensemble_forward.1} parent=1 // pred_fallthru
      _
    // Predicated region
    $region18: #{ensemble_forward.1} parent=1 // pred_check
      _
    $region19: #{ensemble_forward.1} parent=1 // pred_check_branch
      %30 = sbr.rel (0) target = $region21
    $region20: #{ensemble_forward.1} parent=1 // pred_region
      _
    $region21: #{ensemble_forward.1} parent=1 // pred_fallthru
      _
    // Predicated region
    $region22: #{ensemble_forward.1} parent=1 // pred_check
      _
    $region23: #{ensemble_forward.1} parent=1 // pred_check_branch
      %32 = sbr.rel (0) target = $region25
    $region24: #{ensemble_forward.1} parent=1 // pred_region
      %33 = dma.done [#allocation3], 18432
    $region25: #{ensemble_forward.1} parent=1 // pred_fallthru
      _
    %v34 = vld [vmem:[%s0] sm:$0xff]
    %v35 = vlaneseq
    %v36 = vand.u32 %v35, 127
    %37 = vset.pattern.permute.xlu0 0
    %38 = vperm.xlu0 %37, %v34
    %v39 = vpop.permute.xlu0 %38
    %vm40 = vcmp.eq.s32.totalorder %v36, %v39
    %v41 = vsel %vm40, 1, 0
    %v42 = vcvt.s32.f32 %v41
    %v43 = vadd.f32 %v42, 0.0
    %v44 = vadd.s32 %v34, 4
    %45 = vset.pattern.permute.xlu0 1
    %46 = vperm.xlu0 %45, %v44
    %v47 = vpop.permute.xlu0 %46
    %vm48 = vcmp.eq.s32.totalorder %v36, %v47
    %v49 = vsel %vm48, 1, 0
    %v50 = vcvt.s32.f32 %v49
    %v51 = vadd.f32 %v43, %v50
    %v52 = vadd.s32 %v34, 7
    %53 = vset.pattern.permute.xlu0 2
    %54 = vperm.xlu0 %53, %v52
    %v55 = vpop.permute.xlu0 %54
    %vm56 = vcmp.eq.s32.totalorder %v36, %v55
    %v57 = vsel %vm56, 1, 0
    %v58 = vcvt.s32.f32 %v57
    %v59 = vadd.f32 %v51, %v58
    %v60 = vadd.s32 %v34, 10
    %61 = vset.pattern.permute.xlu0 3
    %62 = vperm.xlu0 %61, %v60
    %v63 = vpop.permute.xlu0 %62
    %vm64 = vcmp.eq.s32.totalorder %v36, %v63
    %v65 = vsel %vm64, 1, 0
    %v66 = vcvt.s32.f32 %v65
    %v67 = vadd.f32 %v59, %v66
    %v68 = vld [vmem:[#allocation2] sm:$0xff]
    %v69 = vld [vmem:[#allocation2 + $0x8] sm:$0xff]
    %v70 = vld [vmem:[#allocation2 + $0x10] sm:$0xff]
    %v71 = vld [vmem:[#allocation2 + $0x18] sm:$0xff]
    %v72 = vld [vmem:[#allocation2 + $0x20] sm:$0xff]
    %v73 = vld [vmem:[#allocation2 + $0x28] sm:$0xff]
    %v74 = vld [vmem:[#allocation2 + $0x30] sm:$0xff]
    %v75 = vld [vmem:[#allocation2 + $0x38] sm:$0xff]
    %v76 = vld [vmem:[#allocation2 + $0x40] sm:$0xff]
    %v77 = vld [vmem:[#allocation2 + $0x48] sm:$0xff]
    %v78 = vld [vmem:[#allocation2 + $0x50] sm:$0xff]
    %v79 = vld [vmem:[#allocation2 + $0x58] sm:$0xff]
    %vm80 = vcmask 785408
    %v82 = vsel %vm80, %v67, 0
    %84 = vmatprep.subr.mxu0 0.0
    %85 = vmatpush1.msra.mxu0 %v68
    %86 = vmatprep.subr.mxu0 0.0
    %87 = vmatpush1.msra.mxu0 %v69
    %88 = vmatprep.subr.mxu0 0.0
    %89 = vmatpush1.msra.mxu0 %v70
    %90 = vmatprep.subr.mxu0 0.0
    %91 = vmatpush1.msra.mxu0 %v71
    %92 = vmatprep.subr.mxu0 0.0
    %93 = vmatpush1.msra.mxu0 %v72
    %94 = vmatprep.subr.mxu0 0.0
    %95 = vmatpush1.msra.mxu0 %v73
    %96 = vmatprep.subr.mxu0 0.0
    %97 = vmatpush1.msra.mxu0 %v74
    %98 = vmatprep.subr.mxu0 0.0
    %99 = vmatpush1.msra.mxu0 %v75
    %100 = vmatprep.subr.mxu0 0.0
    %101 = vmatpush1.msra.mxu0 %v76
    %102 = vmatprep.subr.mxu0 0.0
    %103 = vmatpush1.msra.mxu0 %v77
    %104 = vmatprep.subr.mxu0 0.0
    %105 = vmatpush1.msra.mxu0 %v78
    %106 = vmatprep.subr.mxu0 0.0
    %107 = vmatpush1.msra.mxu0 %v79
    %108 = vmatprep.subr.mxu0 0.0
    %109 = vmatpush1.msra.mxu0 0.0
    %110 = vmatprep.subr.mxu0 0.0
    %111 = vmatpush1.msra.mxu0 0.0
    %112 = vmatprep.subr.mxu0 0.0
    %113 = vmatpush1.msra.mxu0 0.0
    %114 = vmatprep.subr.mxu0 0.0
    %115 = vmatpush1.msra.mxu0 0.0
    %116 = vmatprep.subr.mxu0 0.0
    %117 = vmatpush1.msra.mxu0 0.0
    %118 = vmatprep.subr.mxu0 0.0
    %119 = vmatpush1.msra.mxu0 0.0
    %120 = vmatprep.subr.mxu0 0.0
    %121 = vmatpush1.msra.mxu0 0.0
    %122 = vmatprep.subr.mxu0 0.0
    %123 = vmatpush1.msra.mxu0 0.0
    %124 = vmatprep.subr.mxu0 0.0
    %125 = vmatpush1.msra.mxu0 0.0
    %126 = vmatprep.subr.mxu0 0.0
    %127 = vmatpush1.msra.mxu0 0.0
    %128 = vmatprep.subr.mxu0 0.0
    %129 = vmatpush1.msra.mxu0 0.0
    %130 = vmatprep.subr.mxu0 0.0
    %131 = vmatpush1.msra.mxu0 0.0
    %132 = vmatprep.subr.mxu0 0.0
    %133 = vmatpush1.msra.mxu0 0.0
    %134 = vmatprep.subr.mxu0 0.0
    %135 = vmatpush1.msra.mxu0 0.0
    %136 = vmatprep.subr.mxu0 0.0
    %137 = vmatpush1.msra.mxu0 0.0
    %138 = vmatprep.subr.mxu0 0.0
    %139 = vmatpush1.msra.mxu0 0.0
    %140 = vmatprep.subr.mxu0 0.0
    %141 = vmatpush1.msra.mxu0 0.0
    %142 = vmatprep.subr.mxu0 0.0
    %143 = vmatpush1.msra.mxu0 0.0
    %144 = vmatprep.subr.mxu0 0.0
    %145 = vmatpush1.msra.mxu0 0.0
    %146 = vmatprep.subr.mxu0 0.0
    %147 = vmatpush1.msra.mxu0 0.0
    %148 = vmatprep.mubr.f32.mxu0 0.0
    %149 = vmatmul.mubr.f32.gmra.mrb[0].mxu0 %v82
    %v150 = vpop.f32.mrb[0].mxu0
    %v151 = vadd.f32 0.0, %v150
    %v152 = vpop.f32.mrb[0].mxu0
    %153 = vdwg.mxu0
    %v154 = vld [vmem:[%s1] sm:$0xff]
    %155 = vset.pattern.permute.xlu0 0
    %156 = vperm.xlu0 %155, %v154
    %v157 = vpop.permute.xlu0 %156
    %vm158 = vcmp.eq.s32.totalorder %v36, %v157
    %v159 = vsel %vm158, 1, 0
    %v160 = vcvt.s32.f32 %v159
    %v161 = vadd.f32 %v160, 0.0
    %v162 = vadd.s32 %v154, 4
    %163 = vset.pattern.permute.xlu0 1
    %164 = vperm.xlu0 %163, %v162
    %v165 = vpop.permute.xlu0 %164
    %vm166 = vcmp.eq.s32.totalorder %v36, %v165
    %v167 = vsel %vm166, 1, 0
    %v168 = vcvt.s32.f32 %v167
    %v169 = vadd.f32 %v161, %v168
    %v170 = vadd.s32 %v154, 7
    %171 = vset.pattern.permute.xlu0 2
    %172 = vperm.xlu0 %171, %v170
    %v173 = vpop.permute.xlu0 %172
    %vm174 = vcmp.eq.s32.totalorder %v36, %v173
    %v175 = vsel %vm174, 1, 0
    %v176 = vcvt.s32.f32 %v175
    %v177 = vadd.f32 %v169, %v176
    %v178 = vadd.s32 %v154, 10
    %179 = vset.pattern.permute.xlu0 3
    %180 = vperm.xlu0 %179, %v178
    %v181 = vpop.permute.xlu0 %180
    %vm182 = vcmp.eq.s32.totalorder %v36, %v181
    %v183 = vsel %vm182, 1, 0
    %v184 = vcvt.s32.f32 %v183
    %v185 = vadd.f32 %v177, %v184
    %s186 = scalar_lea.vmem [#allocation2], 96
    %v187 = vld [vmem:[%s186] sm:$0xff]
    %v188 = vld [vmem:[%s186 + $0x8] sm:$0xff]
    %v189 = vld [vmem:[%s186 + $0x10] sm:$0xff]
    %v190 = vld [vmem:[%s186 + $0x18] sm:$0xff]
    %v191 = vld [vmem:[%s186 + $0x20] sm:$0xff]
    %v192 = vld [vmem:[%s186 + $0x28] sm:$0xff]
    %v193 = vld [vmem:[%s186 + $0x30] sm:$0xff]
    %v194 = vld [vmem:[%s186 + $0x38] sm:$0xff]
    %v195 = vld [vmem:[%s186 + $0x40] sm:$0xff]
    %v196 = vld [vmem:[%s186 + $0x48] sm:$0xff]
    %v197 = vld [vmem:[%s186 + $0x50] sm:$0xff]
    %v198 = vld [vmem:[%s186 + $0x58] sm:$0xff]
    %v200 = vsel %vm80, %v185, 0
    %202 = vmatprep.subr.mxu0 0.0
    %203 = vmatpush1.msra.mxu0 %v187
    %204 = vmatprep.subr.mxu0 0.0
    %205 = vmatpush1.msra.mxu0 %v188
    %206 = vmatprep.subr.mxu0 0.0
    %207 = vmatpush1.msra.mxu0 %v189
    %208 = vmatprep.subr.mxu0 0.0
    %209 = vmatpush1.msra.mxu0 %v190
    %210 = vmatprep.subr.mxu0 0.0
    %211 = vmatpush1.msra.mxu0 %v191
    %212 = vmatprep.subr.mxu0 0.0
    %213 = vmatpush1.msra.mxu0 %v192
    %214 = vmatprep.subr.mxu0 0.0
    %215 = vmatpush1.msra.mxu0 %v193
    %216 = vmatprep.subr.mxu0 0.0
    %217 = vmatpush1.msra.mxu0 %v194
    %218 = vmatprep.subr.mxu0 0.0
    %219 = vmatpush1.msra.mxu0 %v195
    %220 = vmatprep.subr.mxu0 0.0
    %221 = vmatpush1.msra.mxu0 %v196
    %222 = vmatprep.subr.mxu0 0.0
    %223 = vmatpush1.msra.mxu0 %v197
    %224 = vmatprep.subr.mxu0 0.0
    %225 = vmatpush1.msra.mxu0 %v198
    %226 = vmatprep.subr.mxu0 0.0
    %227 = vmatpush1.msra.mxu0 0.0
    %228 = vmatprep.subr.mxu0 0.0
    %229 = vmatpush1.msra.mxu0 0.0
    %230 = vmatprep.subr.mxu0 0.0
    %231 = vmatpush1.msra.mxu0 0.0
    %232 = vmatprep.subr.mxu0 0.0
    %233 = vmatpush1.msra.mxu0 0.0
    %234 = vmatprep.subr.mxu0 0.0
    %235 = vmatpush1.msra.mxu0 0.0
    %236 = vmatprep.subr.mxu0 0.0
    %237 = vmatpush1.msra.mxu0 0.0
    %238 = vmatprep.subr.mxu0 0.0
    %239 = vmatpush1.msra.mxu0 0.0
    %240 = vmatprep.subr.mxu0 0.0
    %241 = vmatpush1.msra.mxu0 0.0
    %242 = vmatprep.subr.mxu0 0.0
    %243 = vmatpush1.msra.mxu0 0.0
    %244 = vmatprep.subr.mxu0 0.0
    %245 = vmatpush1.msra.mxu0 0.0
    %246 = vmatprep.subr.mxu0 0.0
    %247 = vmatpush1.msra.mxu0 0.0
    %248 = vmatprep.subr.mxu0 0.0
    %249 = vmatpush1.msra.mxu0 0.0
    %250 = vmatprep.subr.mxu0 0.0
    %251 = vmatpush1.msra.mxu0 0.0
    %252 = vmatprep.subr.mxu0 0.0
    %253 = vmatpush1.msra.mxu0 0.0
    %254 = vmatprep.subr.mxu0 0.0
    %255 = vmatpush1.msra.mxu0 0.0
    %256 = vmatprep.subr.mxu0 0.0
    %257 = vmatpush1.msra.mxu0 0.0
    %258 = vmatprep.subr.mxu0 0.0
    %259 = vmatpush1.msra.mxu0 0.0
    %260 = vmatprep.subr.mxu0 0.0
    %261 = vmatpush1.msra.mxu0 0.0
    %262 = vmatprep.subr.mxu0 0.0
    %263 = vmatpush1.msra.mxu0 0.0
    %264 = vmatprep.subr.mxu0 0.0
    %265 = vmatpush1.msra.mxu0 0.0
    %266 = vmatprep.mubr.f32.mxu0 0.0
    %267 = vmatmul.mubr.f32.gmra.mrb[0].mxu0 %v200
    %v268 = vpop.f32.mrb[0].mxu0
    %v269 = vadd.f32 0.0, %v268
    %v270 = vpop.f32.mrb[0].mxu0
    %271 = vdwg.mxu0
    %s272 = scalar_lea.vmem [#allocation2], 192
    %v273 = vld [vmem:[%s272] sm:$0xff]
    %v274 = vld [vmem:[%s272 + $0x8] sm:$0xff]
    %v275 = vld [vmem:[%s272 + $0x10] sm:$0xff]
    %v276 = vld [vmem:[%s272 + $0x18] sm:$0xff]
    %v277 = vld [vmem:[%s272 + $0x20] sm:$0xff]
    %v278 = vld [vmem:[%s272 + $0x28] sm:$0xff]
    %v279 = vld [vmem:[%s272 + $0x30] sm:$0xff]
    %v280 = vld [vmem:[%s272 + $0x38] sm:$0xff]
    %v281 = vld [vmem:[%s272 + $0x40] sm:$0xff]
    %v282 = vld [vmem:[%s272 + $0x48] sm:$0xff]
    %v283 = vld [vmem:[%s272 + $0x50] sm:$0xff]
    %v284 = vld [vmem:[%s272 + $0x58] sm:$0xff]
    %v285 = vld [vmem:[%s4] sm:$0x1]
    %v287 = vlaneseq
    %v288 = vshrl.u32 %v287, 7
    %v289 = vsub.s32 0, %v288
    %v290 = vrot.slane %v285, %v289
    %v293 = vsel %vm80, %v151, 0
    %295 = vmatprep.subr.mxu0 0.0
    %296 = vmatpush1.msra.mxu0 %v273
    %297 = vmatprep.subr.mxu0 0.0
    %298 = vmatpush1.msra.mxu0 %v274
    %299 = vmatprep.subr.mxu0 0.0
    %300 = vmatpush1.msra.mxu0 %v275
    %301 = vmatprep.subr.mxu0 0.0
    %302 = vmatpush1.msra.mxu0 %v276
    %303 = vmatprep.subr.mxu0 0.0
    %304 = vmatpush1.msra.mxu0 %v277
    %305 = vmatprep.subr.mxu0 0.0
    %306 = vmatpush1.msra.mxu0 %v278
    %307 = vmatprep.subr.mxu0 0.0
    %308 = vmatpush1.msra.mxu0 %v279
    %309 = vmatprep.subr.mxu0 0.0
    %310 = vmatpush1.msra.mxu0 %v280
    %311 = vmatprep.subr.mxu0 0.0
    %312 = vmatpush1.msra.mxu0 %v281
    %313 = vmatprep.subr.mxu0 0.0
    %314 = vmatpush1.msra.mxu0 %v282
    %315 = vmatprep.subr.mxu0 0.0
    %316 = vmatpush1.msra.mxu0 %v283
    %317 = vmatprep.subr.mxu0 0.0
    %318 = vmatpush1.msra.mxu0 %v284
    %319 = vmatprep.subr.mxu0 0.0
    %320 = vmatpush1.msra.mxu0 0.0
    %321 = vmatprep.subr.mxu0 0.0
    %322 = vmatpush1.msra.mxu0 0.0
    %323 = vmatprep.subr.mxu0 0.0
    %324 = vmatpush1.msra.mxu0 0.0
    %325 = vmatprep.subr.mxu0 0.0
    %326 = vmatpush1.msra.mxu0 0.0
    %327 = vmatprep.subr.mxu0 0.0
    %328 = vmatpush1.msra.mxu0 0.0
    %329 = vmatprep.subr.mxu0 0.0
    %330 = vmatpush1.msra.mxu0 0.0
    %331 = vmatprep.subr.mxu0 0.0
    %332 = vmatpush1.msra.mxu0 0.0
    %333 = vmatprep.subr.mxu0 0.0
    %334 = vmatpush1.msra.mxu0 0.0
    %335 = vmatprep.subr.mxu0 0.0
    %336 = vmatpush1.msra.mxu0 0.0
    %337 = vmatprep.subr.mxu0 0.0
    %338 = vmatpush1.msra.mxu0 0.0
    %339 = vmatprep.subr.mxu0 0.0
    %340 = vmatpush1.msra.mxu0 0.0
    %341 = vmatprep.subr.mxu0 0.0
    %342 = vmatpush1.msra.mxu0 0.0
    %343 = vmatprep.subr.mxu0 0.0
    %344 = vmatpush1.msra.mxu0 0.0
    %345 = vmatprep.subr.mxu0 0.0
    %346 = vmatpush1.msra.mxu0 0.0
    %347 = vmatprep.subr.mxu0 0.0
    %348 = vmatpush1.msra.mxu0 0.0
    %349 = vmatprep.subr.mxu0 0.0
    %350 = vmatpush1.msra.mxu0 0.0
    %351 = vmatprep.subr.mxu0 0.0
    %352 = vmatpush1.msra.mxu0 0.0
    %353 = vmatprep.subr.mxu0 0.0
    %354 = vmatpush1.msra.mxu0 0.0
    %355 = vmatprep.subr.mxu0 0.0
    %356 = vmatpush1.msra.mxu0 0.0
    %357 = vmatprep.subr.mxu0 0.0
    %358 = vmatpush1.msra.mxu0 0.0
    %359 = vmatprep.mubr.f32.mxu0 0.0
    %360 = vmatmul.mubr.f32.gmra.mrb[0].mxu0 %v293
    %v361 = vpop.f32.mrb[0].mxu0
    %v362 = vadd.f32 %v290, %v361
    %v363 = vpop.f32.mrb[0].mxu0
    %364 = vdwg.mxu0
    %v365 = vmax.f32 %v362, 0.0
    %s366 = scalar_lea.vmem [#allocation2], 288
    %v367 = vld [vmem:[%s366] sm:$0xff]
    %v368 = vld [vmem:[%s366 + $0x8] sm:$0xff]
    %v369 = vld [vmem:[%s366 + $0x10] sm:$0xff]
    %v370 = vld [vmem:[%s366 + $0x18] sm:$0xff]
    %v371 = vld [vmem:[%s366 + $0x20] sm:$0xff]
    %v372 = vld [vmem:[%s366 + $0x28] sm:$0xff]
    %v373 = vld [vmem:[%s366 + $0x30] sm:$0xff]
    %v374 = vld [vmem:[%s366 + $0x38] sm:$0xff]
    %v375 = vld [vmem:[%s366 + $0x40] sm:$0xff]
    %v376 = vld [vmem:[%s366 + $0x48] sm:$0xff]
    %v377 = vld [vmem:[%s366 + $0x50] sm:$0xff]
    %v378 = vld [vmem:[%s366 + $0x58] sm:$0xff]
    %s379 = scalar_lea.vmem %s4, 1
    %v380 = vld [vmem:[%s379] sm:$0x1]
    %v382 = vlaneseq
    %v383 = vshrl.u32 %v382, 7
    %v384 = vsub.s32 0, %v383
    %v385 = vrot.slane %v380, %v384
    %v388 = vsel %vm80, %v365, 0
    %390 = vmatprep.subr.mxu0 0.0
    %391 = vmatpush1.msra.mxu0 %v367
    %392 = vmatprep.subr.mxu0 0.0
    %393 = vmatpush1.msra.mxu0 %v368
    %394 = vmatprep.subr.mxu0 0.0
    %395 = vmatpush1.msra.mxu0 %v369
    %396 = vmatprep.subr.mxu0 0.0
    %397 = vmatpush1.msra.mxu0 %v370
    %398 = vmatprep.subr.mxu0 0.0
    %399 = vmatpush1.msra.mxu0 %v371
    %400 = vmatprep.subr.mxu0 0.0
    %401 = vmatpush1.msra.mxu0 %v372
    %402 = vmatprep.subr.mxu0 0.0
    %403 = vmatpush1.msra.mxu0 %v373
    %404 = vmatprep.subr.mxu0 0.0
    %405 = vmatpush1.msra.mxu0 %v374
    %406 = vmatprep.subr.mxu0 0.0
    %407 = vmatpush1.msra.mxu0 %v375
    %408 = vmatprep.subr.mxu0 0.0
    %409 = vmatpush1.msra.mxu0 %v376
    %410 = vmatprep.subr.mxu0 0.0
    %411 = vmatpush1.msra.mxu0 %v377
    %412 = vmatprep.subr.mxu0 0.0
    %413 = vmatpush1.msra.mxu0 %v378
    %414 = vmatprep.subr.mxu0 0.0
    %415 = vmatpush1.msra.mxu0 0.0
    %416 = vmatprep.subr.mxu0 0.0
    %417 = vmatpush1.msra.mxu0 0.0
    %418 = vmatprep.subr.mxu0 0.0
    %419 = vmatpush1.msra.mxu0 0.0
    %420 = vmatprep.subr.mxu0 0.0
    %421 = vmatpush1.msra.mxu0 0.0
    %422 = vmatprep.subr.mxu0 0.0
    %423 = vmatpush1.msra.mxu0 0.0
    %424 = vmatprep.subr.mxu0 0.0
    %425 = vmatpush1.msra.mxu0 0.0
    %426 = vmatprep.subr.mxu0 0.0
    %427 = vmatpush1.msra.mxu0 0.0
    %428 = vmatprep.subr.mxu0 0.0
    %429 = vmatpush1.msra.mxu0 0.0
    %430 = vmatprep.subr.mxu0 0.0
    %431 = vmatpush1.msra.mxu0 0.0
    %432 = vmatprep.subr.mxu0 0.0
    %433 = vmatpush1.msra.mxu0 0.0
    %434 = vmatprep.subr.mxu0 0.0
    %435 = vmatpush1.msra.mxu0 0.0
    %436 = vmatprep.subr.mxu0 0.0
    %437 = vmatpush1.msra.mxu0 0.0
    %438 = vmatprep.subr.mxu0 0.0
    %439 = vmatpush1.msra.mxu0 0.0
    %440 = vmatprep.subr.mxu0 0.0
    %441 = vmatpush1.msra.mxu0 0.0
    %442 = vmatprep.subr.mxu0 0.0
    %443 = vmatpush1.msra.mxu0 0.0
    %444 = vmatprep.subr.mxu0 0.0
    %445 = vmatpush1.msra.mxu0 0.0
    %446 = vmatprep.subr.mxu0 0.0
    %447 = vmatpush1.msra.mxu0 0.0
    %448 = vmatprep.subr.mxu0 0.0
    %449 = vmatpush1.msra.mxu0 0.0
    %450 = vmatprep.subr.mxu0 0.0
    %451 = vmatpush1.msra.mxu0 0.0
    %452 = vmatprep.subr.mxu0 0.0
    %453 = vmatpush1.msra.mxu0 0.0
    %454 = vmatprep.mubr.f32.mxu0 0.0
    %455 = vmatmul.mubr.f32.gmra.mrb[0].mxu0 %v388
    %v456 = vpop.f32.mrb[0].mxu0
    %v457 = vadd.f32 %v385, %v456
    %v458 = vpop.f32.mrb[0].mxu0
    %459 = vdwg.mxu0
    %v460 = vmax.f32 %v457, 0.0
    %s461 = scalar_lea.vmem [#allocation2], 384
    %v462 = vld [vmem:[%s461] sm:$0xff]
    %v463 = vld [vmem:[%s461 + $0x8] sm:$0xff]
    %v464 = vld [vmem:[%s461 + $0x10] sm:$0xff]
    %v465 = vld [vmem:[%s461 + $0x18] sm:$0xff]
    %v466 = vld [vmem:[%s461 + $0x20] sm:$0xff]
    %v467 = vld [vmem:[%s461 + $0x28] sm:$0xff]
    %v468 = vld [vmem:[%s461 + $0x30] sm:$0xff]
    %v469 = vld [vmem:[%s461 + $0x38] sm:$0xff]
    %v470 = vld [vmem:[%s461 + $0x40] sm:$0xff]
    %v471 = vld [vmem:[%s461 + $0x48] sm:$0xff]
    %v472 = vld [vmem:[%s461 + $0x50] sm:$0xff]
    %v473 = vld [vmem:[%s461 + $0x58] sm:$0xff]
    %s474 = scalar_lea.vmem %s4, 2
    %v475 = vld [vmem:[%s474] sm:$0x1]
    %v477 = vlaneseq
    %v478 = vshrl.u32 %v477, 7
    %v479 = vsub.s32 0, %v478
    %v480 = vrot.slane %v475, %v479
    %v483 = vsel %vm80, %v269, 0
    %485 = vmatprep.subr.mxu0 0.0
    %486 = vmatpush1.msra.mxu0 %v462
    %487 = vmatprep.subr.mxu0 0.0
    %488 = vmatpush1.msra.mxu0 %v463
    %489 = vmatprep.subr.mxu0 0.0
    %490 = vmatpush1.msra.mxu0 %v464
    %491 = vmatprep.subr.mxu0 0.0
    %492 = vmatpush1.msra.mxu0 %v465
    %493 = vmatprep.subr.mxu0 0.0
    %494 = vmatpush1.msra.mxu0 %v466
    %495 = vmatprep.subr.mxu0 0.0
    %496 = vmatpush1.msra.mxu0 %v467
    %497 = vmatprep.subr.mxu0 0.0
    %498 = vmatpush1.msra.mxu0 %v468
    %499 = vmatprep.subr.mxu0 0.0
    %500 = vmatpush1.msra.mxu0 %v469
    %501 = vmatprep.subr.mxu0 0.0
    %502 = vmatpush1.msra.mxu0 %v470
    %503 = vmatprep.subr.mxu0 0.0
    %504 = vmatpush1.msra.mxu0 %v471
    %505 = vmatprep.subr.mxu0 0.0
    %506 = vmatpush1.msra.mxu0 %v472
    %507 = vmatprep.subr.mxu0 0.0
    %508 = vmatpush1.msra.mxu0 %v473
    %509 = vmatprep.subr.mxu0 0.0
    %510 = vmatpush1.msra.mxu0 0.0
    %511 = vmatprep.subr.mxu0 0.0
    %512 = vmatpush1.msra.mxu0 0.0
    %513 = vmatprep.subr.mxu0 0.0
    %514 = vmatpush1.msra.mxu0 0.0
    %515 = vmatprep.subr.mxu0 0.0
    %516 = vmatpush1.msra.mxu0 0.0
    %517 = vmatprep.subr.mxu0 0.0
    %518 = vmatpush1.msra.mxu0 0.0
    %519 = vmatprep.subr.mxu0 0.0
    %520 = vmatpush1.msra.mxu0 0.0
    %521 = vmatprep.subr.mxu0 0.0
    %522 = vmatpush1.msra.mxu0 0.0
    %523 = vmatprep.subr.mxu0 0.0
    %524 = vmatpush1.msra.mxu0 0.0
    %525 = vmatprep.subr.mxu0 0.0
    %526 = vmatpush1.msra.mxu0 0.0
    %527 = vmatprep.subr.mxu0 0.0
    %528 = vmatpush1.msra.mxu0 0.0
    %529 = vmatprep.subr.mxu0 0.0
    %530 = vmatpush1.msra.mxu0 0.0
    %531 = vmatprep.subr.mxu0 0.0
    %532 = vmatpush1.msra.mxu0 0.0
    %533 = vmatprep.subr.mxu0 0.0
    %534 = vmatpush1.msra.mxu0 0.0
    %535 = vmatprep.subr.mxu0 0.0
    %536 = vmatpush1.msra.mxu0 0.0
    %537 = vmatprep.subr.mxu0 0.0
    %538 = vmatpush1.msra.mxu0 0.0
    %539 = vmatprep.subr.mxu0 0.0
    %540 = vmatpush1.msra.mxu0 0.0
    %541 = vmatprep.subr.mxu0 0.0
    %542 = vmatpush1.msra.mxu0 0.0
    %543 = vmatprep.subr.mxu0 0.0
    %544 = vmatpush1.msra.mxu0 0.0
    %545 = vmatprep.subr.mxu0 0.0
    %546 = vmatpush1.msra.mxu0 0.0
    %547 = vmatprep.subr.mxu0 0.0
    %548 = vmatpush1.msra.mxu0 0.0
    %549 = vmatprep.mubr.f32.mxu0 0.0
    %550 = vmatmul.mubr.f32.gmra.mrb[0].mxu0 %v483
    %v551 = vpop.f32.mrb[0].mxu0
    %v552 = vadd.f32 %v480, %v551
    %v553 = vpop.f32.mrb[0].mxu0
    %554 = vdwg.mxu0
    %v555 = vmax.f32 %v552, 0.0
    %s556 = scalar_lea.vmem [#allocation2], 480
    %v557 = vld [vmem:[%s556] sm:$0xff]
    %v558 = vld [vmem:[%s556 + $0x8] sm:$0xff]
    %v559 = vld [vmem:[%s556 + $0x10] sm:$0xff]
    %v560 = vld [vmem:[%s556 + $0x18] sm:$0xff]
    %v561 = vld [vmem:[%s556 + $0x20] sm:$0xff]
    %v562 = vld [vmem:[%s556 + $0x28] sm:$0xff]
    %v563 = vld [vmem:[%s556 + $0x30] sm:$0xff]
    %v564 = vld [vmem:[%s556 + $0x38] sm:$0xff]
    %v565 = vld [vmem:[%s556 + $0x40] sm:$0xff]
    %v566 = vld [vmem:[%s556 + $0x48] sm:$0xff]
    %v567 = vld [vmem:[%s556 + $0x50] sm:$0xff]
    %v568 = vld [vmem:[%s556 + $0x58] sm:$0xff]
    %s569 = scalar_lea.vmem %s4, 3
    %v570 = vld [vmem:[%s569] sm:$0x1]
    %v572 = vlaneseq
    %v573 = vshrl.u32 %v572, 7
    %v574 = vsub.s32 0, %v573
    %v575 = vrot.slane %v570, %v574
    %v578 = vsel %vm80, %v555, 0
    %580 = vmatprep.subr.mxu0 0.0
    %581 = vmatpush1.msra.mxu0 %v557
    %582 = vmatprep.subr.mxu0 0.0
    %583 = vmatpush1.msra.mxu0 %v558
    %584 = vmatprep.subr.mxu0 0.0
    %585 = vmatpush1.msra.mxu0 %v559
    %586 = vmatprep.subr.mxu0 0.0
    %587 = vmatpush1.msra.mxu0 %v560
    %588 = vmatprep.subr.mxu0 0.0
    %589 = vmatpush1.msra.mxu0 %v561
    %590 = vmatprep.subr.mxu0 0.0
    %591 = vmatpush1.msra.mxu0 %v562
    %592 = vmatprep.subr.mxu0 0.0
    %593 = vmatpush1.msra.mxu0 %v563
    %594 = vmatprep.subr.mxu0 0.0
    %595 = vmatpush1.msra.mxu0 %v564
    %596 = vmatprep.subr.mxu0 0.0
    %597 = vmatpush1.msra.mxu0 %v565
    %598 = vmatprep.subr.mxu0 0.0
    %599 = vmatpush1.msra.mxu0 %v566
    %600 = vmatprep.subr.mxu0 0.0
    %601 = vmatpush1.msra.mxu0 %v567
    %602 = vmatprep.subr.mxu0 0.0
    %603 = vmatpush1.msra.mxu0 %v568
    %604 = vmatprep.subr.mxu0 0.0
    %605 = vmatpush1.msra.mxu0 0.0
    %606 = vmatprep.subr.mxu0 0.0
    %607 = vmatpush1.msra.mxu0 0.0
    %608 = vmatprep.subr.mxu0 0.0
    %609 = vmatpush1.msra.mxu0 0.0
    %610 = vmatprep.subr.mxu0 0.0
    %611 = vmatpush1.msra.mxu0 0.0
    %612 = vmatprep.subr.mxu0 0.0
    %613 = vmatpush1.msra.mxu0 0.0
    %614 = vmatprep.subr.mxu0 0.0
    %615 = vmatpush1.msra.mxu0 0.0
    %616 = vmatprep.subr.mxu0 0.0
    %617 = vmatpush1.msra.mxu0 0.0
    %618 = vmatprep.subr.mxu0 0.0
    %619 = vmatpush1.msra.mxu0 0.0
    %620 = vmatprep.subr.mxu0 0.0
    %621 = vmatpush1.msra.mxu0 0.0
    %622 = vmatprep.subr.mxu0 0.0
    %623 = vmatpush1.msra.mxu0 0.0
    %624 = vmatprep.subr.mxu0 0.0
    %625 = vmatpush1.msra.mxu0 0.0
    %626 = vmatprep.subr.mxu0 0.0
    %627 = vmatpush1.msra.mxu0 0.0
    %628 = vmatprep.subr.mxu0 0.0
    %629 = vmatpush1.msra.mxu0 0.0
    %630 = vmatprep.subr.mxu0 0.0
    %631 = vmatpush1.msra.mxu0 0.0
    %632 = vmatprep.subr.mxu0 0.0
    %633 = vmatpush1.msra.mxu0 0.0
    %634 = vmatprep.subr.mxu0 0.0
    %635 = vmatpush1.msra.mxu0 0.0
    %636 = vmatprep.subr.mxu0 0.0
    %637 = vmatpush1.msra.mxu0 0.0
    %638 = vmatprep.subr.mxu0 0.0
    %639 = vmatpush1.msra.mxu0 0.0
    %640 = vmatprep.subr.mxu0 0.0
    %641 = vmatpush1.msra.mxu0 0.0
    %642 = vmatprep.subr.mxu0 0.0
    %643 = vmatpush1.msra.mxu0 0.0
    %644 = vmatprep.mubr.f32.mxu0 0.0
    %645 = vmatmul.mubr.f32.gmra.mrb[0].mxu0 %v578
    %v646 = vpop.f32.mrb[0].mxu0
    %v647 = vadd.f32 %v575, %v646
    %v648 = vpop.f32.mrb[0].mxu0
    %649 = vdwg.mxu0
    %v650 = vmax.f32 %v647, 0.0
    %s651 = scalar_lea.vmem [#allocation2], 576
    %v652 = vld [vmem:[%s651] sm:$0xff]
    %v653 = vld [vmem:[%s651 + $0x8] sm:$0xff]
    %v654 = vld [vmem:[%s2] sm:$0xff]
    %s655 = scalar_lea.vmem %s4, 4
    %v656 = vld [vmem:[%s655] sm:$0x1]
    %v658 = vlaneseq
    %v659 = vshrl.u32 %v658, 7
    %v660 = vsub.s32 0, %v659
    %v661 = vrot.slane %v656, %v660
    %vm663 = vcmask 130048
    %v665 = vsel %vm663, %v654, 0
    %667 = vmatprep.subr.mxu0 0.0
    %668 = vmatpush1.msra.mxu0 %v652
    %669 = vmatprep.subr.mxu0 0.0
    %670 = vmatpush1.msra.mxu0 %v653
    %671 = vmatprep.subr.mxu0 0.0
    %672 = vmatpush1.msra.mxu0 0.0
    %673 = vmatprep.subr.mxu0 0.0
    %674 = vmatpush1.msra.mxu0 0.0
    %675 = vmatprep.subr.mxu0 0.0
    %676 = vmatpush1.msra.mxu0 0.0
    %677 = vmatprep.subr.mxu0 0.0
    %678 = vmatpush1.msra.mxu0 0.0
    %679 = vmatprep.subr.mxu0 0.0
    %680 = vmatpush1.msra.mxu0 0.0
    %681 = vmatprep.subr.mxu0 0.0
    %682 = vmatpush1.msra.mxu0 0.0
    %683 = vmatprep.subr.mxu0 0.0
    %684 = vmatpush1.msra.mxu0 0.0
    %685 = vmatprep.subr.mxu0 0.0
    %686 = vmatpush1.msra.mxu0 0.0
    %687 = vmatprep.subr.mxu0 0.0
    %688 = vmatpush1.msra.mxu0 0.0
    %689 = vmatprep.subr.mxu0 0.0
    %690 = vmatpush1.msra.mxu0 0.0
    %691 = vmatprep.subr.mxu0 0.0
    %692 = vmatpush1.msra.mxu0 0.0
    %693 = vmatprep.subr.mxu0 0.0
    %694 = vmatpush1.msra.mxu0 0.0
    %695 = vmatprep.subr.mxu0 0.0
    %696 = vmatpush1.msra.mxu0 0.0
    %697 = vmatprep.subr.mxu0 0.0
    %698 = vmatpush1.msra.mxu0 0.0
    %699 = vmatprep.subr.mxu0 0.0
    %700 = vmatpush1.msra.mxu0 0.0
    %701 = vmatprep.subr.mxu0 0.0
    %702 = vmatpush1.msra.mxu0 0.0
    %703 = vmatprep.subr.mxu0 0.0
    %704 = vmatpush1.msra.mxu0 0.0
    %705 = vmatprep.subr.mxu0 0.0
    %706 = vmatpush1.msra.mxu0 0.0
    %707 = vmatprep.subr.mxu0 0.0
    %708 = vmatpush1.msra.mxu0 0.0
    %709 = vmatprep.subr.mxu0 0.0
    %710 = vmatpush1.msra.mxu0 0.0
    %711 = vmatprep.subr.mxu0 0.0
    %712 = vmatpush1.msra.mxu0 0.0
    %713 = vmatprep.subr.mxu0 0.0
    %714 = vmatpush1.msra.mxu0 0.0
    %715 = vmatprep.subr.mxu0 0.0
    %716 = vmatpush1.msra.mxu0 0.0
    %717 = vmatprep.subr.mxu0 0.0
    %718 = vmatpush1.msra.mxu0 0.0
    %719 = vmatprep.subr.mxu0 0.0
    %720 = vmatpush1.msra.mxu0 0.0
    %721 = vmatprep.subr.mxu0 0.0
    %722 = vmatpush1.msra.mxu0 0.0
    %723 = vmatprep.subr.mxu0 0.0
    %724 = vmatpush1.msra.mxu0 0.0
    %725 = vmatprep.subr.mxu0 0.0
    %726 = vmatpush1.msra.mxu0 0.0
    %727 = vmatprep.subr.mxu0 0.0
    %728 = vmatpush1.msra.mxu0 0.0
    %729 = vmatprep.subr.mxu0 0.0
    %730 = vmatpush1.msra.mxu0 0.0
    %731 = vmatprep.mubr.f32.mxu0 0.0
    %732 = vmatmul.mubr.f32.gmra.mrb[0].mxu0 %v665
    %v733 = vpop.f32.mrb[0].mxu0
    %v734 = vadd.f32 %v661, %v733
    %v735 = vpop.f32.mrb[0].mxu0
    %736 = vdwg.mxu0
    %v737 = vmax.f32 %v734, 0.0
    %s738 = scalar_lea.vmem [#allocation2], 672
    %v739 = vld [vmem:[%s738] sm:$0xff]
    %v740 = vld [vmem:[%s738 + $0x8] sm:$0xff]
    %v741 = vld [vmem:[%s738 + $0x10] sm:$0xff]
    %v742 = vld [vmem:[%s738 + $0x18] sm:$0xff]
    %v743 = vld [vmem:[%s738 + $0x20] sm:$0xff]
    %v744 = vld [vmem:[%s738 + $0x28] sm:$0xff]
    %v745 = vld [vmem:[%s738 + $0x30] sm:$0xff]
    %v746 = vld [vmem:[%s738 + $0x38] sm:$0xff]
    %v747 = vld [vmem:[%s738 + $0x40] sm:$0xff]
    %v748 = vld [vmem:[%s738 + $0x48] sm:$0xff]
    %v749 = vld [vmem:[%s738 + $0x50] sm:$0xff]
    %v750 = vld [vmem:[%s738 + $0x58] sm:$0xff]
    %s751 = scalar_lea.vmem %s4, 5
    %v752 = vld [vmem:[%s751] sm:$0x1]
    %v754 = vlaneseq
    %v755 = vshrl.u32 %v754, 7
    %v756 = vsub.s32 0, %v755
    %v757 = vrot.slane %v752, %v756
    %v760 = vsel %vm80, %v737, 0
    %762 = vmatprep.subr.mxu0 0.0
    %763 = vmatpush1.msra.mxu0 %v739
    %764 = vmatprep.subr.mxu0 0.0
    %765 = vmatpush1.msra.mxu0 %v740
    %766 = vmatprep.subr.mxu0 0.0
    %767 = vmatpush1.msra.mxu0 %v741
    %768 = vmatprep.subr.mxu0 0.0
    %769 = vmatpush1.msra.mxu0 %v742
    %770 = vmatprep.subr.mxu0 0.0
    %771 = vmatpush1.msra.mxu0 %v743
    %772 = vmatprep.subr.mxu0 0.0
    %773 = vmatpush1.msra.mxu0 %v744
    %774 = vmatprep.subr.mxu0 0.0
    %775 = vmatpush1.msra.mxu0 %v745
    %776 = vmatprep.subr.mxu0 0.0
    %777 = vmatpush1.msra.mxu0 %v746
    %778 = vmatprep.subr.mxu0 0.0
    %779 = vmatpush1.msra.mxu0 %v747
    %780 = vmatprep.subr.mxu0 0.0
    %781 = vmatpush1.msra.mxu0 %v748
    %782 = vmatprep.subr.mxu0 0.0
    %783 = vmatpush1.msra.mxu0 %v749
    %784 = vmatprep.subr.mxu0 0.0
    %785 = vmatpush1.msra.mxu0 %v750
    %786 = vmatprep.subr.mxu0 0.0
    %787 = vmatpush1.msra.mxu0 0.0
    %788 = vmatprep.subr.mxu0 0.0
    %789 = vmatpush1.msra.mxu0 0.0
    %790 = vmatprep.subr.mxu0 0.0
    %791 = vmatpush1.msra.mxu0 0.0
    %792 = vmatprep.subr.mxu0 0.0
    %793 = vmatpush1.msra.mxu0 0.0
    %794 = vmatprep.subr.mxu0 0.0
    %795 = vmatpush1.msra.mxu0 0.0
    %796 = vmatprep.subr.mxu0 0.0
    %797 = vmatpush1.msra.mxu0 0.0
    %798 = vmatprep.subr.mxu0 0.0
    %799 = vmatpush1.msra.mxu0 0.0
    %800 = vmatprep.subr.mxu0 0.0
    %801 = vmatpush1.msra.mxu0 0.0
    %802 = vmatprep.subr.mxu0 0.0
    %803 = vmatpush1.msra.mxu0 0.0
    %804 = vmatprep.subr.mxu0 0.0
    %805 = vmatpush1.msra.mxu0 0.0
    %806 = vmatprep.subr.mxu0 0.0
    %807 = vmatpush1.msra.mxu0 0.0
    %808 = vmatprep.subr.mxu0 0.0
    %809 = vmatpush1.msra.mxu0 0.0
    %810 = vmatprep.subr.mxu0 0.0
    %811 = vmatpush1.msra.mxu0 0.0
    %812 = vmatprep.subr.mxu0 0.0
    %813 = vmatpush1.msra.mxu0 0.0
    %814 = vmatprep.subr.mxu0 0.0
    %815 = vmatpush1.msra.mxu0 0.0
    %816 = vmatprep.subr.mxu0 0.0
    %817 = vmatpush1.msra.mxu0 0.0
    %818 = vmatprep.subr.mxu0 0.0
    %819 = vmatpush1.msra.mxu0 0.0
    %820 = vmatprep.subr.mxu0 0.0
    %821 = vmatpush1.msra.mxu0 0.0
    %822 = vmatprep.subr.mxu0 0.0
    %823 = vmatpush1.msra.mxu0 0.0
    %824 = vmatprep.subr.mxu0 0.0
    %825 = vmatpush1.msra.mxu0 0.0
    %826 = vmatprep.mubr.f32.mxu0 0.0
    %827 = vmatmul.mubr.f32.gmra.mrb[0].mxu0 %v760
    %v828 = vpop.f32.mrb[0].mxu0
    %v829 = vadd.f32 %v757, %v828
    %v830 = vpop.f32.mrb[0].mxu0
    %831 = vdwg.mxu0
    %v832 = vmax.f32 %v829, 0.0
    %s833 = scalar_lea.vmem [#allocation2], 768
    %v834 = vld [vmem:[%s833] sm:$0xff]
    %v835 = vld [vmem:[%s833 + $0x8] sm:$0xff]
    %v836 = vld [vmem:[%s833 + $0x10] sm:$0xff]
    %v837 = vld [vmem:[%s833 + $0x18] sm:$0xff]
    %v838 = vld [vmem:[%s833 + $0x20] sm:$0xff]
    %v839 = vld [vmem:[%s833 + $0x28] sm:$0xff]
    %v840 = vld [vmem:[%s833 + $0x30] sm:$0xff]
    %v841 = vld [vmem:[%s833 + $0x38] sm:$0xff]
    %v842 = vld [vmem:[%s833 + $0x40] sm:$0xff]
    %v843 = vld [vmem:[%s833 + $0x48] sm:$0xff]
    %v844 = vld [vmem:[%s833 + $0x50] sm:$0xff]
    %v845 = vld [vmem:[%s833 + $0x58] sm:$0xff]
    %s846 = scalar_lea.vmem [#allocation2], 864
    %v847 = vld [vmem:[%s846] sm:$0xff]
    %v848 = vld [vmem:[%s846 + $0x8] sm:$0xff]
    %v849 = vld [vmem:[%s846 + $0x10] sm:$0xff]
    %v850 = vld [vmem:[%s846 + $0x18] sm:$0xff]
    %v851 = vld [vmem:[%s846 + $0x20] sm:$0xff]
    %v852 = vld [vmem:[%s846 + $0x28] sm:$0xff]
    %v853 = vld [vmem:[%s846 + $0x30] sm:$0xff]
    %v854 = vld [vmem:[%s846 + $0x38] sm:$0xff]
    %v855 = vld [vmem:[%s846 + $0x40] sm:$0xff]
    %v856 = vld [vmem:[%s846 + $0x48] sm:$0xff]
    %v857 = vld [vmem:[%s846 + $0x50] sm:$0xff]
    %v858 = vld [vmem:[%s846 + $0x58] sm:$0xff]
    %v860 = vsel %vm80, %v650, 0
    %862 = vmatprep.subr.mxu0 0.0
    %863 = vmatpush1.msra.mxu0 %v847
    %864 = vmatprep.subr.mxu0 0.0
    %865 = vmatpush1.msra.mxu0 %v848
    %866 = vmatprep.subr.mxu0 0.0
    %867 = vmatpush1.msra.mxu0 %v849
    %868 = vmatprep.subr.mxu0 0.0
    %869 = vmatpush1.msra.mxu0 %v850
    %870 = vmatprep.subr.mxu0 0.0
    %871 = vmatpush1.msra.mxu0 %v851
    %872 = vmatprep.subr.mxu0 0.0
    %873 = vmatpush1.msra.mxu0 %v852
    %874 = vmatprep.subr.mxu0 0.0
    %875 = vmatpush1.msra.mxu0 %v853
    %876 = vmatprep.subr.mxu0 0.0
    %877 = vmatpush1.msra.mxu0 %v854
    %878 = vmatprep.subr.mxu0 0.0
    %879 = vmatpush1.msra.mxu0 %v855
    %880 = vmatprep.subr.mxu0 0.0
    %881 = vmatpush1.msra.mxu0 %v856
    %882 = vmatprep.subr.mxu0 0.0
    %883 = vmatpush1.msra.mxu0 %v857
    %884 = vmatprep.subr.mxu0 0.0
    %885 = vmatpush1.msra.mxu0 %v858
    %886 = vmatprep.subr.mxu0 0.0
    %887 = vmatpush1.msra.mxu0 0.0
    %888 = vmatprep.subr.mxu0 0.0
    %889 = vmatpush1.msra.mxu0 0.0
    %890 = vmatprep.subr.mxu0 0.0
    %891 = vmatpush1.msra.mxu0 0.0
    %892 = vmatprep.subr.mxu0 0.0
    %893 = vmatpush1.msra.mxu0 0.0
    %894 = vmatprep.subr.mxu0 0.0
    %895 = vmatpush1.msra.mxu0 0.0
    %896 = vmatprep.subr.mxu0 0.0
    %897 = vmatpush1.msra.mxu0 0.0
    %898 = vmatprep.subr.mxu0 0.0
    %899 = vmatpush1.msra.mxu0 0.0
    %900 = vmatprep.subr.mxu0 0.0
    %901 = vmatpush1.msra.mxu0 0.0
    %902 = vmatprep.subr.mxu0 0.0
    %903 = vmatpush1.msra.mxu0 0.0
    %904 = vmatprep.subr.mxu0 0.0
    %905 = vmatpush1.msra.mxu0 0.0
    %906 = vmatprep.subr.mxu0 0.0
    %907 = vmatpush1.msra.mxu0 0.0
    %908 = vmatprep.subr.mxu0 0.0
    %909 = vmatpush1.msra.mxu0 0.0
    %910 = vmatprep.subr.mxu0 0.0
    %911 = vmatpush1.msra.mxu0 0.0
    %912 = vmatprep.subr.mxu0 0.0
    %913 = vmatpush1.msra.mxu0 0.0
    %914 = vmatprep.subr.mxu0 0.0
    %915 = vmatpush1.msra.mxu0 0.0
    %916 = vmatprep.subr.mxu0 0.0
    %917 = vmatpush1.msra.mxu0 0.0
    %918 = vmatprep.subr.mxu0 0.0
    %919 = vmatpush1.msra.mxu0 0.0
    %920 = vmatprep.subr.mxu0 0.0
    %921 = vmatpush1.msra.mxu0 0.0
    %922 = vmatprep.subr.mxu0 0.0
    %923 = vmatpush1.msra.mxu0 0.0
    %924 = vmatprep.subr.mxu0 0.0
    %925 = vmatpush1.msra.mxu0 0.0
    %926 = vmatprep.mubr.f32.mxu0 0.0
    %927 = vmatmul.mubr.f32.gmra.mrb[0].mxu0 %v860
    %v928 = vpop.f32.mrb[0].mxu0
    %v929 = vadd.f32 0.0, %v928
    %v930 = vpop.f32.mrb[0].mxu0
    %931 = vdwg.mxu0
    %v933 = vsel %vm80, %v460, 0
    %935 = vmatprep.subr.mxu0 0.0
    %936 = vmatpush1.msra.mxu0 %v834
    %937 = vmatprep.subr.mxu0 0.0
    %938 = vmatpush1.msra.mxu0 %v835
    %939 = vmatprep.subr.mxu0 0.0
    %940 = vmatpush1.msra.mxu0 %v836
    %941 = vmatprep.subr.mxu0 0.0
    %942 = vmatpush1.msra.mxu0 %v837
    %943 = vmatprep.subr.mxu0 0.0
    %944 = vmatpush1.msra.mxu0 %v838
    %945 = vmatprep.subr.mxu0 0.0
    %946 = vmatpush1.msra.mxu0 %v839
    %947 = vmatprep.subr.mxu0 0.0
    %948 = vmatpush1.msra.mxu0 %v840
    %949 = vmatprep.subr.mxu0 0.0
    %950 = vmatpush1.msra.mxu0 %v841
    %951 = vmatprep.subr.mxu0 0.0
    %952 = vmatpush1.msra.mxu0 %v842
    %953 = vmatprep.subr.mxu0 0.0
    %954 = vmatpush1.msra.mxu0 %v843
    %955 = vmatprep.subr.mxu0 0.0
    %956 = vmatpush1.msra.mxu0 %v844
    %957 = vmatprep.subr.mxu0 0.0
    %958 = vmatpush1.msra.mxu0 %v845
    %959 = vmatprep.subr.mxu0 0.0
    %960 = vmatpush1.msra.mxu0 0.0
    %961 = vmatprep.subr.mxu0 0.0
    %962 = vmatpush1.msra.mxu0 0.0
    %963 = vmatprep.subr.mxu0 0.0
    %964 = vmatpush1.msra.mxu0 0.0
    %965 = vmatprep.subr.mxu0 0.0
    %966 = vmatpush1.msra.mxu0 0.0
    %967 = vmatprep.subr.mxu0 0.0
    %968 = vmatpush1.msra.mxu0 0.0
    %969 = vmatprep.subr.mxu0 0.0
    %970 = vmatpush1.msra.mxu0 0.0
    %971 = vmatprep.subr.mxu0 0.0
    %972 = vmatpush1.msra.mxu0 0.0
    %973 = vmatprep.subr.mxu0 0.0
    %974 = vmatpush1.msra.mxu0 0.0
    %975 = vmatprep.subr.mxu0 0.0
    %976 = vmatpush1.msra.mxu0 0.0
    %977 = vmatprep.subr.mxu0 0.0
    %978 = vmatpush1.msra.mxu0 0.0
    %979 = vmatprep.subr.mxu0 0.0
    %980 = vmatpush1.msra.mxu0 0.0
    %981 = vmatprep.subr.mxu0 0.0
    %982 = vmatpush1.msra.mxu0 0.0
    %983 = vmatprep.subr.mxu0 0.0
    %984 = vmatpush1.msra.mxu0 0.0
    %985 = vmatprep.subr.mxu0 0.0
    %986 = vmatpush1.msra.mxu0 0.0
    %987 = vmatprep.subr.mxu0 0.0
    %988 = vmatpush1.msra.mxu0 0.0
    %989 = vmatprep.subr.mxu0 0.0
    %990 = vmatpush1.msra.mxu0 0.0
    %991 = vmatprep.subr.mxu0 0.0
    %992 = vmatpush1.msra.mxu0 0.0
    %993 = vmatprep.subr.mxu0 0.0
    %994 = vmatpush1.msra.mxu0 0.0
    %995 = vmatprep.subr.mxu0 0.0
    %996 = vmatpush1.msra.mxu0 0.0
    %997 = vmatprep.subr.mxu0 0.0
    %998 = vmatpush1.msra.mxu0 0.0
    %999 = vmatprep.mubr.f32.mxu0 0.0
    %1000 = vmatmul.mubr.f32.gmra.mrb[0].mxu0 %v933
    %v1001 = vpop.f32.mrb[0].mxu0
    %v1002 = vadd.f32 %v929, %v1001
    %v1003 = vpop.f32.mrb[0].mxu0
    %1004 = vdwg.mxu0
    %s1005 = scalar_lea.vmem [#allocation2], 960
    %v1006 = vld [vmem:[%s1005] sm:$0xff]
    %v1007 = vld [vmem:[%s1005 + $0x8] sm:$0xff]
    %v1008 = vld [vmem:[%s1005 + $0x10] sm:$0xff]
    %v1009 = vld [vmem:[%s1005 + $0x18] sm:$0xff]
    %v1010 = vld [vmem:[%s1005 + $0x20] sm:$0xff]
    %v1011 = vld [vmem:[%s1005 + $0x28] sm:$0xff]
    %v1012 = vld [vmem:[%s1005 + $0x30] sm:$0xff]
    %v1013 = vld [vmem:[%s1005 + $0x38] sm:$0xff]
    %v1014 = vld [vmem:[%s1005 + $0x40] sm:$0xff]
    %v1015 = vld [vmem:[%s1005 + $0x48] sm:$0xff]
    %v1016 = vld [vmem:[%s1005 + $0x50] sm:$0xff]
    %v1017 = vld [vmem:[%s1005 + $0x58] sm:$0xff]
    %v1019 = vsel %vm80, %v832, 0
    %1021 = vmatprep.subr.mxu0 0.0
    %1022 = vmatpush1.msra.mxu0 %v1006
    %1023 = vmatprep.subr.mxu0 0.0
    %1024 = vmatpush1.msra.mxu0 %v1007
    %1025 = vmatprep.subr.mxu0 0.0
    %1026 = vmatpush1.msra.mxu0 %v1008
    %1027 = vmatprep.subr.mxu0 0.0
    %1028 = vmatpush1.msra.mxu0 %v1009
    %1029 = vmatprep.subr.mxu0 0.0
    %1030 = vmatpush1.msra.mxu0 %v1010
    %1031 = vmatprep.subr.mxu0 0.0
    %1032 = vmatpush1.msra.mxu0 %v1011
    %1033 = vmatprep.subr.mxu0 0.0
    %1034 = vmatpush1.msra.mxu0 %v1012
    %1035 = vmatprep.subr.mxu0 0.0
    %1036 = vmatpush1.msra.mxu0 %v1013
    %1037 = vmatprep.subr.mxu0 0.0
    %1038 = vmatpush1.msra.mxu0 %v1014
    %1039 = vmatprep.subr.mxu0 0.0
    %1040 = vmatpush1.msra.mxu0 %v1015
    %1041 = vmatprep.subr.mxu0 0.0
    %1042 = vmatpush1.msra.mxu0 %v1016
    %1043 = vmatprep.subr.mxu0 0.0
    %1044 = vmatpush1.msra.mxu0 %v1017
    %1045 = vmatprep.subr.mxu0 0.0
    %1046 = vmatpush1.msra.mxu0 0.0
    %1047 = vmatprep.subr.mxu0 0.0
    %1048 = vmatpush1.msra.mxu0 0.0
    %1049 = vmatprep.subr.mxu0 0.0
    %1050 = vmatpush1.msra.mxu0 0.0
    %1051 = vmatprep.subr.mxu0 0.0
    %1052 = vmatpush1.msra.mxu0 0.0
    %1053 = vmatprep.subr.mxu0 0.0
    %1054 = vmatpush1.msra.mxu0 0.0
    %1055 = vmatprep.subr.mxu0 0.0
    %1056 = vmatpush1.msra.mxu0 0.0
    %1057 = vmatprep.subr.mxu0 0.0
    %1058 = vmatpush1.msra.mxu0 0.0
    %1059 = vmatprep.subr.mxu0 0.0
    %1060 = vmatpush1.msra.mxu0 0.0
    %1061 = vmatprep.subr.mxu0 0.0
    %1062 = vmatpush1.msra.mxu0 0.0
    %1063 = vmatprep.subr.mxu0 0.0
    %1064 = vmatpush1.msra.mxu0 0.0
    %1065 = vmatprep.subr.mxu0 0.0
    %1066 = vmatpush1.msra.mxu0 0.0
    %1067 = vmatprep.subr.mxu0 0.0
    %1068 = vmatpush1.msra.mxu0 0.0
    %1069 = vmatprep.subr.mxu0 0.0
    %1070 = vmatpush1.msra.mxu0 0.0
    %1071 = vmatprep.subr.mxu0 0.0
    %1072 = vmatpush1.msra.mxu0 0.0
    %1073 = vmatprep.subr.mxu0 0.0
    %1074 = vmatpush1.msra.mxu0 0.0
    %1075 = vmatprep.subr.mxu0 0.0
    %1076 = vmatpush1.msra.mxu0 0.0
    %1077 = vmatprep.subr.mxu0 0.0
    %1078 = vmatpush1.msra.mxu0 0.0
    %1079 = vmatprep.subr.mxu0 0.0
    %1080 = vmatpush1.msra.mxu0 0.0
    %1081 = vmatprep.subr.mxu0 0.0
    %1082 = vmatpush1.msra.mxu0 0.0
    %1083 = vmatprep.subr.mxu0 0.0
    %1084 = vmatpush1.msra.mxu0 0.0
    %1085 = vmatprep.mubr.f32.mxu0 0.0
    %1086 = vmatmul.mubr.f32.gmra.mrb[0].mxu0 %v1019
    %v1087 = vpop.f32.mrb[0].mxu0
    %v1088 = vadd.f32 0.0, %v1087
    %v1089 = vpop.f32.mrb[0].mxu0
    %1090 = vdwg.mxu0
    %v1091 = vadd.f32 %v1002, %v1088
    %s1092 = scalar_lea.vmem %s4, 6
    %v1093 = vld [vmem:[%s1092] sm:$0x1]
    %v1095 = vlaneseq
    %v1096 = vshrl.u32 %v1095, 7
    %v1097 = vsub.s32 0, %v1096
    %v1098 = vrot.slane %v1093, %v1097
    %v1100 = vadd.f32 %v1091, %v1098
    %v1101 = vmax.f32 %v1100, 0.0
    %s1102 = scalar_lea.vmem [#allocation2], 1056
    %v1103 = vld [vmem:[%s1102] sm:$0xff]
    %v1104 = vld [vmem:[%s1102 + $0x8] sm:$0xff]
    %v1105 = vld [vmem:[%s1102 + $0x10] sm:$0xff]
    %v1106 = vld [vmem:[%s1102 + $0x18] sm:$0xff]
    %v1107 = vld [vmem:[%s1102 + $0x20] sm:$0xff]
    %v1108 = vld [vmem:[%s1102 + $0x28] sm:$0xff]
    %v1109 = vld [vmem:[%s1102 + $0x30] sm:$0xff]
    %v1110 = vld [vmem:[%s1102 + $0x38] sm:$0xff]
    %v1111 = vld [vmem:[%s1102 + $0x40] sm:$0xff]
    %v1112 = vld [vmem:[%s1102 + $0x48] sm:$0xff]
    %v1113 = vld [vmem:[%s1102 + $0x50] sm:$0xff]
    %v1114 = vld [vmem:[%s1102 + $0x58] sm:$0xff]
    %s1115 = scalar_lea.vmem %s4, 7
    %v1116 = vld [vmem:[%s1115] sm:$0x1]
    %v1118 = vlaneseq
    %v1119 = vshrl.u32 %v1118, 7
    %v1120 = vsub.s32 0, %v1119
    %v1121 = vrot.slane %v1116, %v1120
    %v1124 = vsel %vm80, %v1101, 0
    %1126 = vmatprep.subr.mxu0 0.0
    %1127 = vmatpush1.msra.mxu0 %v1103
    %1128 = vmatprep.subr.mxu0 0.0
    %1129 = vmatpush1.msra.mxu0 %v1104
    %1130 = vmatprep.subr.mxu0 0.0
    %1131 = vmatpush1.msra.mxu0 %v1105
    %1132 = vmatprep.subr.mxu0 0.0
    %1133 = vmatpush1.msra.mxu0 %v1106
    %1134 = vmatprep.subr.mxu0 0.0
    %1135 = vmatpush1.msra.mxu0 %v1107
    %1136 = vmatprep.subr.mxu0 0.0
    %1137 = vmatpush1.msra.mxu0 %v1108
    %1138 = vmatprep.subr.mxu0 0.0
    %1139 = vmatpush1.msra.mxu0 %v1109
    %1140 = vmatprep.subr.mxu0 0.0
    %1141 = vmatpush1.msra.mxu0 %v1110
    %1142 = vmatprep.subr.mxu0 0.0
    %1143 = vmatpush1.msra.mxu0 %v1111
    %1144 = vmatprep.subr.mxu0 0.0
    %1145 = vmatpush1.msra.mxu0 %v1112
    %1146 = vmatprep.subr.mxu0 0.0
    %1147 = vmatpush1.msra.mxu0 %v1113
    %1148 = vmatprep.subr.mxu0 0.0
    %1149 = vmatpush1.msra.mxu0 %v1114
    %1150 = vmatprep.subr.mxu0 0.0
    %1151 = vmatpush1.msra.mxu0 0.0
    %1152 = vmatprep.subr.mxu0 0.0
    %1153 = vmatpush1.msra.mxu0 0.0
    %1154 = vmatprep.subr.mxu0 0.0
    %1155 = vmatpush1.msra.mxu0 0.0
    %1156 = vmatprep.subr.mxu0 0.0
    %1157 = vmatpush1.msra.mxu0 0.0
    %1158 = vmatprep.subr.mxu0 0.0
    %1159 = vmatpush1.msra.mxu0 0.0
    %1160 = vmatprep.subr.mxu0 0.0
    %1161 = vmatpush1.msra.mxu0 0.0
    %1162 = vmatprep.subr.mxu0 0.0
    %1163 = vmatpush1.msra.mxu0 0.0
    %1164 = vmatprep.subr.mxu0 0.0
    %1165 = vmatpush1.msra.mxu0 0.0
    %1166 = vmatprep.subr.mxu0 0.0
    %1167 = vmatpush1.msra.mxu0 0.0
    %1168 = vmatprep.subr.mxu0 0.0
    %1169 = vmatpush1.msra.mxu0 0.0
    %1170 = vmatprep.subr.mxu0 0.0
    %1171 = vmatpush1.msra.mxu0 0.0
    %1172 = vmatprep.subr.mxu0 0.0
    %1173 = vmatpush1.msra.mxu0 0.0
    %1174 = vmatprep.subr.mxu0 0.0
    %1175 = vmatpush1.msra.mxu0 0.0
    %1176 = vmatprep.subr.mxu0 0.0
    %1177 = vmatpush1.msra.mxu0 0.0
    %1178 = vmatprep.subr.mxu0 0.0
    %1179 = vmatpush1.msra.mxu0 0.0
    %1180 = vmatprep.subr.mxu0 0.0
    %1181 = vmatpush1.msra.mxu0 0.0
    %1182 = vmatprep.subr.mxu0 0.0
    %1183 = vmatpush1.msra.mxu0 0.0
    %1184 = vmatprep.subr.mxu0 0.0
    %1185 = vmatpush1.msra.mxu0 0.0
    %1186 = vmatprep.subr.mxu0 0.0
    %1187 = vmatpush1.msra.mxu0 0.0
    %1188 = vmatprep.subr.mxu0 0.0
    %1189 = vmatpush1.msra.mxu0 0.0
    %1190 = vmatprep.mubr.f32.mxu0 0.0
    %1191 = vmatmul.mubr.f32.gmra.mrb[0].mxu0 %v1124
    %v1192 = vpop.f32.mrb[0].mxu0
    %v1193 = vadd.f32 %v1121, %v1192
    %v1194 = vpop.f32.mrb[0].mxu0
    %1195 = vdwg.mxu0
    %v1196 = vtanh.pop %v1193
    %1198 = vrot.lane.b32.xlu0 %v1196, 127
    %v1199 = vpop.permute.xlu0 %1198
    %v1201 = vadd.f32 %v1196, %v1199
    %1202 = vrot.lane.b32.xlu0 %v1196, 126
    %v1203 = vpop.permute.xlu0 %1202
    %v1205 = vadd.f32 %v1201, %v1203
    %v1206 = vmul.f32 %v1205, 0.33333334
    %vm1207 = vcmask 7168
    %1208 = vst.msk [vmem:[%s5] sm:$0xff] %vm1207, %v1206
    // Predicated region
    $region26: #{ensemble_forward.1} parent=1 // pred_check
      _
    $region27: #{ensemble_forward.1} parent=1 // pred_check_branch
      %1210 = sbr.rel (0) target = $region29
    $region28: #{ensemble_forward.1} parent=1 // pred_region
      _
    $region29: #{ensemble_forward.1} parent=1 // pred_fallthru
      _
    // Predicated region
    $region30: #{ensemble_forward.1} parent=1 // pred_check
      _
    $region31: #{ensemble_forward.1} parent=1 // pred_check_branch
      %1212 = sbr.rel (0) target = $region33
    $region32: #{ensemble_forward.1} parent=1 // pred_region
      _
    $region33: #{ensemble_forward.1} parent=1 // pred_fallthru
      _
    %1213 = vsyncpa [#allocation3], 1

</llo_original>
